<compile_context>
chip_gen: v7x
topology: tpu7x:2x2x1
jax: 0.10.0
libtpu: 0.0.40
codegen_flags: <defaults>
</compile_context>

<pallas_src>
import math

import jax
import jax.numpy as jnp
from jax.experimental import pallas as pl
from jax.experimental.pallas import tpu as pltpu

K = 3                                # kernel size of every conv
H = W = 16                           # spatial size fed to the model
SHIFT = (K - 1) * W + (K - 1)        # flat-length shrink per conv layer (= 34)
L0 = H * W                           # 256: flattened x      (per channel)
L1 = L0 - SHIFT                      # 222: flattened v1
L2 = L1 - SHIFT                      # 188: flattened v2
L4 = L2 - SHIFT                      # 154: flattened h4


def _conv3x3_flat(chans_in, w_ref, b_ref, cout, out_len):
    """VALID stride-1 3x3 conv as a shifted-MAC over the flattened H*W axis.

    chans_in: list of `cin` arrays, each (N, Lin) f32 with row stride W.
    w_ref:    SMEM f32[cout*cin*9]   (flattened (cout, cin, 3, 3) weights)
    b_ref:    SMEM f32[cout]
    Returns a list of `cout` arrays, each (N, out_len) f32 (same row stride W).
    Flat positions whose column index exceeds the shrinking valid width carry
    junk that is never read downstream (valid region shrinks by 2 rows/cols
    per layer; the wrapper slices only the valid window).
    """
    cin = len(chans_in)
    n = chans_in[0].shape[0]
    # Accumulators initialized straight from the bias (no zeros+add pass).
    accs = [jnp.full((n, out_len), b_ref[co], dtype=jnp.float32)
            for co in range(cout)]
    for ci in range(cin):
        xc = chans_in[ci]
        for kh in range(K):
            for kw in range(K):
                s = kh * W + kw
                tap = xc[:, s:s + out_len]          # static shifted slice (shared across cout)
                for co in range(cout):
                    wv = w_ref[(co * cin + ci) * (K * K) + kh * K + kw]
                    accs[co] = accs[co] + wv * tap
    return accs


def _fused_convchain_kernel(x_ref, w1_ref, b1_ref, w2_ref, b2_ref,
                            w4_ref, b4_ref, v2_ref, h4_ref):
    # x_ref: (3, N, L0) f32 in VMEM (channel-major, flattened H*W).
    x_ch = [x_ref[ci] for ci in range(3)]
    v1 = _conv3x3_flat(x_ch, w1_ref, b1_ref, cout=2, out_len=L1)
    v2 = _conv3x3_flat(v1, w2_ref, b2_ref, cout=2, out_len=L2)
    for co in range(2):
        v2_ref[co] = v2[co]
    h4 = _conv3x3_flat(v2, w4_ref, b4_ref, cout=2, out_len=L4)
    for co in range(2):
        h4_ref[co] = h4[co]
    # conv3(v1) is intentionally omitted: h3 never reaches the model's outputs.


def _unflatten(flat, oh, ow):
    """(cout, N, L) flat slab with row stride W -> (N, cout, oh, ow)."""
    cout, n, L = flat.shape
    padded = jnp.pad(flat, ((0, 0), (0, 0), (0, oh * W - L)))
    img = padded.reshape(cout, n, oh, W)[:, :, :, :ow]
    return jnp.transpose(img, (1, 0, 2, 3))


@jax.jit
def model_forward(x, params):
    """Returns (v2, h4), matching the PyTorch Model.forward outputs."""
    (w1, b1), (w2, b2), _conv3_params_unused, (w4, b4) = params
    n, cin, h, w = x.shape
    assert (cin, h, w) == (3, H, W)
    # Channel-major, flattened-HW, lane-dense layout: (Cin, N, H*W)
    x_flat = jnp.transpose(x, (1, 0, 2, 3)).reshape(cin, n, h * w)

    v2_flat, h4_flat = pl.pallas_call(
        _fused_convchain_kernel,
        out_shape=(jax.ShapeDtypeStruct((2, n, L2), jnp.float32),
                   jax.ShapeDtypeStruct((2, n, L4), jnp.float32)),
        in_specs=[pl.BlockSpec(memory_space=pltpu.MemorySpace.VMEM)]
        + [pl.BlockSpec(memory_space=pltpu.MemorySpace.SMEM)] * 6,
        out_specs=(pl.BlockSpec(memory_space=pltpu.MemorySpace.VMEM),
                   pl.BlockSpec(memory_space=pltpu.MemorySpace.VMEM)),
    )(x_flat, w1.reshape(-1), b1, w2.reshape(-1), b2, w4.reshape(-1), b4)

    v2 = _unflatten(v2_flat, H - 2 * (K - 1), W - 2 * (K - 1))   # (N, 2, 12, 12)
    h4 = _unflatten(h4_flat, H - 3 * (K - 1), W - 3 * (K - 1))   # (N, 2, 10, 10)
    return v2, h4


def init_conv(key, cout, cin, k):
    """Deterministic PyTorch-style (uniform +-1/sqrt(fan_in)) init."""
    kw, kb = jax.random.split(key)
    fan_in = cin * k * k
    bound = 1.0 / math.sqrt(fan_in)
    w = jax.random.uniform(kw, (cout, cin, k, k), jnp.float32, -bound, bound)
    b = jax.random.uniform(kb, (cout,), jnp.float32, -bound, bound)
    return w, b


def reference_conv(x, w, b):
    out = jax.lax.conv_general_dilated(
        x, w, window_strides=(1, 1), padding="VALID",
        dimension_numbers=("NCHW", "OIHW", "NCHW"))
    return out + b[None, :, None, None]


if __name__ == "__main__":
    key = jax.random.PRNGKey(0)
    kx, k1, k2, k3, k4 = jax.random.split(key, 5)

    x = jax.random.normal(kx, (2, 3, H, W), jnp.float32)

    params = (
        init_conv(k1, 2, 3, 3),   # conv1
        init_conv(k2, 2, 2, 3),   # conv2
        init_conv(k3, 2, 2, 3),   # conv3 (parameters exist, output is dead in forward)
        init_conv(k4, 2, 2, 3),   # conv4
    )

    v2, h4 = model_forward(x, params)
    jax.block_until_ready((v2, h4))

    # sanity check against XLA's conv
    (w1, b1), (w2, b2), (w3, b3), (w4, b4) = params
    rv1 = reference_conv(x, w1, b1)
    rv2 = reference_conv(rv1, w2, b2)
    rh4 = reference_conv(rv2, w4, b4)
    assert v2.shape == (2, 2, 12, 12) and h4.shape == (2, 2, 10, 10)
    assert jnp.allclose(v2, rv2, atol=1e-4, rtol=1e-4), "conv chain mismatch (v2)"
    assert jnp.allclose(h4, rh4, atol=1e-4, rtol=1e-4), "conv chain mismatch (h4)"

    print("KERNEL_OK")
</pallas_src>

<mosaic_0001>
module attributes {stable_mosaic.version = 11 : i64} {
  func.func @_fused_convchain_kernel(%arg0: memref<3x2x256xf32, #tpu.memory_space<vmem>>, %arg1: memref<54xf32, #tpu.memory_space<smem>>, %arg2: memref<2xf32, #tpu.memory_space<smem>>, %arg3: memref<36xf32, #tpu.memory_space<smem>>, %arg4: memref<2xf32, #tpu.memory_space<smem>>, %arg5: memref<36xf32, #tpu.memory_space<smem>>, %arg6: memref<2xf32, #tpu.memory_space<smem>>, %arg7: memref<2x2x188xf32, #tpu.memory_space<vmem>>, %arg8: memref<2x2x154xf32, #tpu.memory_space<vmem>>) attributes {dimension_semantics = [], scalar_prefetch = 0 : i64, scratch_operands = 0 : i64, tpu.core_type = #tpu.core_type<tc>} {
    %c0 = arith.constant 0 : index
    %c0_0 = arith.constant 0 : index
    %c0_1 = arith.constant 0 : index
    %0 = vector.load %arg0[%c0, %c0_0, %c0_1] : memref<3x2x256xf32, #tpu.memory_space<vmem>>, vector<1x2x256xf32>
    %1 = vector.shape_cast %0 : vector<1x2x256xf32> to vector<2x256xf32>
    %c1 = arith.constant 1 : index
    %c0_2 = arith.constant 0 : index
    %c0_3 = arith.constant 0 : index
    %2 = vector.load %arg0[%c1, %c0_2, %c0_3] : memref<3x2x256xf32, #tpu.memory_space<vmem>>, vector<1x2x256xf32>
    %3 = vector.shape_cast %2 : vector<1x2x256xf32> to vector<2x256xf32>
    %c2 = arith.constant 2 : index
    %c0_4 = arith.constant 0 : index
    %c0_5 = arith.constant 0 : index
    %4 = vector.load %arg0[%c2, %c0_4, %c0_5] : memref<3x2x256xf32, #tpu.memory_space<vmem>>, vector<1x2x256xf32>
    %5 = vector.shape_cast %4 : vector<1x2x256xf32> to vector<2x256xf32>
    %c0_6 = arith.constant 0 : index
    %6 = memref.load %arg2[%c0_6] : memref<2xf32, #tpu.memory_space<smem>>
    %7 = vector.broadcast %6 : f32 to vector<2x222xf32>
    %c1_7 = arith.constant 1 : index
    %8 = memref.load %arg2[%c1_7] : memref<2xf32, #tpu.memory_space<smem>>
    %9 = vector.broadcast %8 : f32 to vector<2x222xf32>
    %10 = vector.extract_strided_slice %1 {offsets = [0, 0], sizes = [2, 222], strides = [1, 1]} : vector<2x256xf32> to vector<2x222xf32>
    %c0_8 = arith.constant 0 : index
    %11 = memref.load %arg1[%c0_8] : memref<54xf32, #tpu.memory_space<smem>>
    %12 = vector.broadcast %11 : f32 to vector<2x222xf32>
    %13 = arith.mulf %12, %10 : vector<2x222xf32>
    %14 = arith.addf %7, %13 : vector<2x222xf32>
    %c27 = arith.constant 27 : index
    %15 = memref.load %arg1[%c27] : memref<54xf32, #tpu.memory_space<smem>>
    %16 = vector.broadcast %15 : f32 to vector<2x222xf32>
    %17 = arith.mulf %16, %10 : vector<2x222xf32>
    %18 = arith.addf %9, %17 : vector<2x222xf32>
    %19 = vector.extract_strided_slice %1 {offsets = [0, 1], sizes = [2, 222], strides = [1, 1]} : vector<2x256xf32> to vector<2x222xf32>
    %c1_9 = arith.constant 1 : index
    %20 = memref.load %arg1[%c1_9] : memref<54xf32, #tpu.memory_space<smem>>
    %21 = vector.broadcast %20 : f32 to vector<2x222xf32>
    %22 = arith.mulf %21, %19 : vector<2x222xf32>
    %23 = arith.addf %14, %22 : vector<2x222xf32>
    %c28 = arith.constant 28 : index
    %24 = memref.load %arg1[%c28] : memref<54xf32, #tpu.memory_space<smem>>
    %25 = vector.broadcast %24 : f32 to vector<2x222xf32>
    %26 = arith.mulf %25, %19 : vector<2x222xf32>
    %27 = arith.addf %18, %26 : vector<2x222xf32>
    %28 = vector.extract_strided_slice %1 {offsets = [0, 2], sizes = [2, 222], strides = [1, 1]} : vector<2x256xf32> to vector<2x222xf32>
    %c2_10 = arith.constant 2 : index
    %29 = memref.load %arg1[%c2_10] : memref<54xf32, #tpu.memory_space<smem>>
    %30 = vector.broadcast %29 : f32 to vector<2x222xf32>
    %31 = arith.mulf %30, %28 : vector<2x222xf32>
    %32 = arith.addf %23, %31 : vector<2x222xf32>
    %c29 = arith.constant 29 : index
    %33 = memref.load %arg1[%c29] : memref<54xf32, #tpu.memory_space<smem>>
    %34 = vector.broadcast %33 : f32 to vector<2x222xf32>
    %35 = arith.mulf %34, %28 : vector<2x222xf32>
    %36 = arith.addf %27, %35 : vector<2x222xf32>
    %37 = vector.extract_strided_slice %1 {offsets = [0, 16], sizes = [2, 222], strides = [1, 1]} : vector<2x256xf32> to vector<2x222xf32>
    %c3 = arith.constant 3 : index
    %38 = memref.load %arg1[%c3] : memref<54xf32, #tpu.memory_space<smem>>
    %39 = vector.broadcast %38 : f32 to vector<2x222xf32>
    %40 = arith.mulf %39, %37 : vector<2x222xf32>
    %41 = arith.addf %32, %40 : vector<2x222xf32>
    %c30 = arith.constant 30 : index
    %42 = memref.load %arg1[%c30] : memref<54xf32, #tpu.memory_space<smem>>
    %43 = vector.broadcast %42 : f32 to vector<2x222xf32>
    %44 = arith.mulf %43, %37 : vector<2x222xf32>
    %45 = arith.addf %36, %44 : vector<2x222xf32>
    %46 = vector.extract_strided_slice %1 {offsets = [0, 17], sizes = [2, 222], strides = [1, 1]} : vector<2x256xf32> to vector<2x222xf32>
    %c4 = arith.constant 4 : index
    %47 = memref.load %arg1[%c4] : memref<54xf32, #tpu.memory_space<smem>>
    %48 = vector.broadcast %47 : f32 to vector<2x222xf32>
    %49 = arith.mulf %48, %46 : vector<2x222xf32>
    %50 = arith.addf %41, %49 : vector<2x222xf32>
    %c31 = arith.constant 31 : index
    %51 = memref.load %arg1[%c31] : memref<54xf32, #tpu.memory_space<smem>>
    %52 = vector.broadcast %51 : f32 to vector<2x222xf32>
    %53 = arith.mulf %52, %46 : vector<2x222xf32>
    %54 = arith.addf %45, %53 : vector<2x222xf32>
    %55 = vector.extract_strided_slice %1 {offsets = [0, 18], sizes = [2, 222], strides = [1, 1]} : vector<2x256xf32> to vector<2x222xf32>
    %c5 = arith.constant 5 : index
    %56 = memref.load %arg1[%c5] : memref<54xf32, #tpu.memory_space<smem>>
    %57 = vector.broadcast %56 : f32 to vector<2x222xf32>
    %58 = arith.mulf %57, %55 : vector<2x222xf32>
    %59 = arith.addf %50, %58 : vector<2x222xf32>
    %c32 = arith.constant 32 : index
    %60 = memref.load %arg1[%c32] : memref<54xf32, #tpu.memory_space<smem>>
    %61 = vector.broadcast %60 : f32 to vector<2x222xf32>
    %62 = arith.mulf %61, %55 : vector<2x222xf32>
    %63 = arith.addf %54, %62 : vector<2x222xf32>
    %64 = vector.extract_strided_slice %1 {offsets = [0, 32], sizes = [2, 222], strides = [1, 1]} : vector<2x256xf32> to vector<2x222xf32>
    %c6 = arith.constant 6 : index
    %65 = memref.load %arg1[%c6] : memref<54xf32, #tpu.memory_space<smem>>
    %66 = vector.broadcast %65 : f32 to vector<2x222xf32>
    %67 = arith.mulf %66, %64 : vector<2x222xf32>
    %68 = arith.addf %59, %67 : vector<2x222xf32>
    %c33 = arith.constant 33 : index
    %69 = memref.load %arg1[%c33] : memref<54xf32, #tpu.memory_space<smem>>
    %70 = vector.broadcast %69 : f32 to vector<2x222xf32>
    %71 = arith.mulf %70, %64 : vector<2x222xf32>
    %72 = arith.addf %63, %71 : vector<2x222xf32>
    %73 = vector.extract_strided_slice %1 {offsets = [0, 33], sizes = [2, 222], strides = [1, 1]} : vector<2x256xf32> to vector<2x222xf32>
    %c7 = arith.constant 7 : index
    %74 = memref.load %arg1[%c7] : memref<54xf32, #tpu.memory_space<smem>>
    %75 = vector.broadcast %74 : f32 to vector<2x222xf32>
    %76 = arith.mulf %75, %73 : vector<2x222xf32>
    %77 = arith.addf %68, %76 : vector<2x222xf32>
    %c34 = arith.constant 34 : index
    %78 = memref.load %arg1[%c34] : memref<54xf32, #tpu.memory_space<smem>>
    %79 = vector.broadcast %78 : f32 to vector<2x222xf32>
    %80 = arith.mulf %79, %73 : vector<2x222xf32>
    %81 = arith.addf %72, %80 : vector<2x222xf32>
    %82 = vector.extract_strided_slice %1 {offsets = [0, 34], sizes = [2, 222], strides = [1, 1]} : vector<2x256xf32> to vector<2x222xf32>
    %c8 = arith.constant 8 : index
    %83 = memref.load %arg1[%c8] : memref<54xf32, #tpu.memory_space<smem>>
    %84 = vector.broadcast %83 : f32 to vector<2x222xf32>
    %85 = arith.mulf %84, %82 : vector<2x222xf32>
    %86 = arith.addf %77, %85 : vector<2x222xf32>
    %c35 = arith.constant 35 : index
    %87 = memref.load %arg1[%c35] : memref<54xf32, #tpu.memory_space<smem>>
    %88 = vector.broadcast %87 : f32 to vector<2x222xf32>
    %89 = arith.mulf %88, %82 : vector<2x222xf32>
    %90 = arith.addf %81, %89 : vector<2x222xf32>
    %91 = vector.extract_strided_slice %3 {offsets = [0, 0], sizes = [2, 222], strides = [1, 1]} : vector<2x256xf32> to vector<2x222xf32>
    %c9 = arith.constant 9 : index
    %92 = memref.load %arg1[%c9] : memref<54xf32, #tpu.memory_space<smem>>
    %93 = vector.broadcast %92 : f32 to vector<2x222xf32>
    %94 = arith.mulf %93, %91 : vector<2x222xf32>
    %95 = arith.addf %86, %94 : vector<2x222xf32>
    %c36 = arith.constant 36 : index
    %96 = memref.load %arg1[%c36] : memref<54xf32, #tpu.memory_space<smem>>
    %97 = vector.broadcast %96 : f32 to vector<2x222xf32>
    %98 = arith.mulf %97, %91 : vector<2x222xf32>
    %99 = arith.addf %90, %98 : vector<2x222xf32>
    %100 = vector.extract_strided_slice %3 {offsets = [0, 1], sizes = [2, 222], strides = [1, 1]} : vector<2x256xf32> to vector<2x222xf32>
    %c10 = arith.constant 10 : index
    %101 = memref.load %arg1[%c10] : memref<54xf32, #tpu.memory_space<smem>>
    %102 = vector.broadcast %101 : f32 to vector<2x222xf32>
    %103 = arith.mulf %102, %100 : vector<2x222xf32>
    %104 = arith.addf %95, %103 : vector<2x222xf32>
    %c37 = arith.constant 37 : index
    %105 = memref.load %arg1[%c37] : memref<54xf32, #tpu.memory_space<smem>>
    %106 = vector.broadcast %105 : f32 to vector<2x222xf32>
    %107 = arith.mulf %106, %100 : vector<2x222xf32>
    %108 = arith.addf %99, %107 : vector<2x222xf32>
    %109 = vector.extract_strided_slice %3 {offsets = [0, 2], sizes = [2, 222], strides = [1, 1]} : vector<2x256xf32> to vector<2x222xf32>
    %c11 = arith.constant 11 : index
    %110 = memref.load %arg1[%c11] : memref<54xf32, #tpu.memory_space<smem>>
    %111 = vector.broadcast %110 : f32 to vector<2x222xf32>
    %112 = arith.mulf %111, %109 : vector<2x222xf32>
    %113 = arith.addf %104, %112 : vector<2x222xf32>
    %c38 = arith.constant 38 : index
    %114 = memref.load %arg1[%c38] : memref<54xf32, #tpu.memory_space<smem>>
    %115 = vector.broadcast %114 : f32 to vector<2x222xf32>
    %116 = arith.mulf %115, %109 : vector<2x222xf32>
    %117 = arith.addf %108, %116 : vector<2x222xf32>
    %118 = vector.extract_strided_slice %3 {offsets = [0, 16], sizes = [2, 222], strides = [1, 1]} : vector<2x256xf32> to vector<2x222xf32>
    %c12 = arith.constant 12 : index
    %119 = memref.load %arg1[%c12] : memref<54xf32, #tpu.memory_space<smem>>
    %120 = vector.broadcast %119 : f32 to vector<2x222xf32>
    %121 = arith.mulf %120, %118 : vector<2x222xf32>
    %122 = arith.addf %113, %121 : vector<2x222xf32>
    %c39 = arith.constant 39 : index
    %123 = memref.load %arg1[%c39] : memref<54xf32, #tpu.memory_space<smem>>
    %124 = vector.broadcast %123 : f32 to vector<2x222xf32>
    %125 = arith.mulf %124, %118 : vector<2x222xf32>
    %126 = arith.addf %117, %125 : vector<2x222xf32>
    %127 = vector.extract_strided_slice %3 {offsets = [0, 17], sizes = [2, 222], strides = [1, 1]} : vector<2x256xf32> to vector<2x222xf32>
    %c13 = arith.constant 13 : index
    %128 = memref.load %arg1[%c13] : memref<54xf32, #tpu.memory_space<smem>>
    %129 = vector.broadcast %128 : f32 to vector<2x222xf32>
    %130 = arith.mulf %129, %127 : vector<2x222xf32>
    %131 = arith.addf %122, %130 : vector<2x222xf32>
    %c40 = arith.constant 40 : index
    %132 = memref.load %arg1[%c40] : memref<54xf32, #tpu.memory_space<smem>>
    %133 = vector.broadcast %132 : f32 to vector<2x222xf32>
    %134 = arith.mulf %133, %127 : vector<2x222xf32>
    %135 = arith.addf %126, %134 : vector<2x222xf32>
    %136 = vector.extract_strided_slice %3 {offsets = [0, 18], sizes = [2, 222], strides = [1, 1]} : vector<2x256xf32> to vector<2x222xf32>
    %c14 = arith.constant 14 : index
    %137 = memref.load %arg1[%c14] : memref<54xf32, #tpu.memory_space<smem>>
    %138 = vector.broadcast %137 : f32 to vector<2x222xf32>
    %139 = arith.mulf %138, %136 : vector<2x222xf32>
    %140 = arith.addf %131, %139 : vector<2x222xf32>
    %c41 = arith.constant 41 : index
    %141 = memref.load %arg1[%c41] : memref<54xf32, #tpu.memory_space<smem>>
    %142 = vector.broadcast %141 : f32 to vector<2x222xf32>
    %143 = arith.mulf %142, %136 : vector<2x222xf32>
    %144 = arith.addf %135, %143 : vector<2x222xf32>
    %145 = vector.extract_strided_slice %3 {offsets = [0, 32], sizes = [2, 222], strides = [1, 1]} : vector<2x256xf32> to vector<2x222xf32>
    %c15 = arith.constant 15 : index
    %146 = memref.load %arg1[%c15] : memref<54xf32, #tpu.memory_space<smem>>
    %147 = vector.broadcast %146 : f32 to vector<2x222xf32>
    %148 = arith.mulf %147, %145 : vector<2x222xf32>
    %149 = arith.addf %140, %148 : vector<2x222xf32>
    %c42 = arith.constant 42 : index
    %150 = memref.load %arg1[%c42] : memref<54xf32, #tpu.memory_space<smem>>
    %151 = vector.broadcast %150 : f32 to vector<2x222xf32>
    %152 = arith.mulf %151, %145 : vector<2x222xf32>
    %153 = arith.addf %144, %152 : vector<2x222xf32>
    %154 = vector.extract_strided_slice %3 {offsets = [0, 33], sizes = [2, 222], strides = [1, 1]} : vector<2x256xf32> to vector<2x222xf32>
    %c16 = arith.constant 16 : index
    %155 = memref.load %arg1[%c16] : memref<54xf32, #tpu.memory_space<smem>>
    %156 = vector.broadcast %155 : f32 to vector<2x222xf32>
    %157 = arith.mulf %156, %154 : vector<2x222xf32>
    %158 = arith.addf %149, %157 : vector<2x222xf32>
    %c43 = arith.constant 43 : index
    %159 = memref.load %arg1[%c43] : memref<54xf32, #tpu.memory_space<smem>>
    %160 = vector.broadcast %159 : f32 to vector<2x222xf32>
    %161 = arith.mulf %160, %154 : vector<2x222xf32>
    %162 = arith.addf %153, %161 : vector<2x222xf32>
    %163 = vector.extract_strided_slice %3 {offsets = [0, 34], sizes = [2, 222], strides = [1, 1]} : vector<2x256xf32> to vector<2x222xf32>
    %c17 = arith.constant 17 : index
    %164 = memref.load %arg1[%c17] : memref<54xf32, #tpu.memory_space<smem>>
    %165 = vector.broadcast %164 : f32 to vector<2x222xf32>
    %166 = arith.mulf %165, %163 : vector<2x222xf32>
    %167 = arith.addf %158, %166 : vector<2x222xf32>
    %c44 = arith.constant 44 : index
    %168 = memref.load %arg1[%c44] : memref<54xf32, #tpu.memory_space<smem>>
    %169 = vector.broadcast %168 : f32 to vector<2x222xf32>
    %170 = arith.mulf %169, %163 : vector<2x222xf32>
    %171 = arith.addf %162, %170 : vector<2x222xf32>
    %172 = vector.extract_strided_slice %5 {offsets = [0, 0], sizes = [2, 222], strides = [1, 1]} : vector<2x256xf32> to vector<2x222xf32>
    %c18 = arith.constant 18 : index
    %173 = memref.load %arg1[%c18] : memref<54xf32, #tpu.memory_space<smem>>
    %174 = vector.broadcast %173 : f32 to vector<2x222xf32>
    %175 = arith.mulf %174, %172 : vector<2x222xf32>
    %176 = arith.addf %167, %175 : vector<2x222xf32>
    %c45 = arith.constant 45 : index
    %177 = memref.load %arg1[%c45] : memref<54xf32, #tpu.memory_space<smem>>
    %178 = vector.broadcast %177 : f32 to vector<2x222xf32>
    %179 = arith.mulf %178, %172 : vector<2x222xf32>
    %180 = arith.addf %171, %179 : vector<2x222xf32>
    %181 = vector.extract_strided_slice %5 {offsets = [0, 1], sizes = [2, 222], strides = [1, 1]} : vector<2x256xf32> to vector<2x222xf32>
    %c19 = arith.constant 19 : index
    %182 = memref.load %arg1[%c19] : memref<54xf32, #tpu.memory_space<smem>>
    %183 = vector.broadcast %182 : f32 to vector<2x222xf32>
    %184 = arith.mulf %183, %181 : vector<2x222xf32>
    %185 = arith.addf %176, %184 : vector<2x222xf32>
    %c46 = arith.constant 46 : index
    %186 = memref.load %arg1[%c46] : memref<54xf32, #tpu.memory_space<smem>>
    %187 = vector.broadcast %186 : f32 to vector<2x222xf32>
    %188 = arith.mulf %187, %181 : vector<2x222xf32>
    %189 = arith.addf %180, %188 : vector<2x222xf32>
    %190 = vector.extract_strided_slice %5 {offsets = [0, 2], sizes = [2, 222], strides = [1, 1]} : vector<2x256xf32> to vector<2x222xf32>
    %c20 = arith.constant 20 : index
    %191 = memref.load %arg1[%c20] : memref<54xf32, #tpu.memory_space<smem>>
    %192 = vector.broadcast %191 : f32 to vector<2x222xf32>
    %193 = arith.mulf %192, %190 : vector<2x222xf32>
    %194 = arith.addf %185, %193 : vector<2x222xf32>
    %c47 = arith.constant 47 : index
    %195 = memref.load %arg1[%c47] : memref<54xf32, #tpu.memory_space<smem>>
    %196 = vector.broadcast %195 : f32 to vector<2x222xf32>
    %197 = arith.mulf %196, %190 : vector<2x222xf32>
    %198 = arith.addf %189, %197 : vector<2x222xf32>
    %199 = vector.extract_strided_slice %5 {offsets = [0, 16], sizes = [2, 222], strides = [1, 1]} : vector<2x256xf32> to vector<2x222xf32>
    %c21 = arith.constant 21 : index
    %200 = memref.load %arg1[%c21] : memref<54xf32, #tpu.memory_space<smem>>
    %201 = vector.broadcast %200 : f32 to vector<2x222xf32>
    %202 = arith.mulf %201, %199 : vector<2x222xf32>
    %203 = arith.addf %194, %202 : vector<2x222xf32>
    %c48 = arith.constant 48 : index
    %204 = memref.load %arg1[%c48] : memref<54xf32, #tpu.memory_space<smem>>
    %205 = vector.broadcast %204 : f32 to vector<2x222xf32>
    %206 = arith.mulf %205, %199 : vector<2x222xf32>
    %207 = arith.addf %198, %206 : vector<2x222xf32>
    %208 = vector.extract_strided_slice %5 {offsets = [0, 17], sizes = [2, 222], strides = [1, 1]} : vector<2x256xf32> to vector<2x222xf32>
    %c22 = arith.constant 22 : index
    %209 = memref.load %arg1[%c22] : memref<54xf32, #tpu.memory_space<smem>>
    %210 = vector.broadcast %209 : f32 to vector<2x222xf32>
    %211 = arith.mulf %210, %208 : vector<2x222xf32>
    %212 = arith.addf %203, %211 : vector<2x222xf32>
    %c49 = arith.constant 49 : index
    %213 = memref.load %arg1[%c49] : memref<54xf32, #tpu.memory_space<smem>>
    %214 = vector.broadcast %213 : f32 to vector<2x222xf32>
    %215 = arith.mulf %214, %208 : vector<2x222xf32>
    %216 = arith.addf %207, %215 : vector<2x222xf32>
    %217 = vector.extract_strided_slice %5 {offsets = [0, 18], sizes = [2, 222], strides = [1, 1]} : vector<2x256xf32> to vector<2x222xf32>
    %c23 = arith.constant 23 : index
    %218 = memref.load %arg1[%c23] : memref<54xf32, #tpu.memory_space<smem>>
    %219 = vector.broadcast %218 : f32 to vector<2x222xf32>
    %220 = arith.mulf %219, %217 : vector<2x222xf32>
    %221 = arith.addf %212, %220 : vector<2x222xf32>
    %c50 = arith.constant 50 : index
    %222 = memref.load %arg1[%c50] : memref<54xf32, #tpu.memory_space<smem>>
    %223 = vector.broadcast %222 : f32 to vector<2x222xf32>
    %224 = arith.mulf %223, %217 : vector<2x222xf32>
    %225 = arith.addf %216, %224 : vector<2x222xf32>
    %226 = vector.extract_strided_slice %5 {offsets = [0, 32], sizes = [2, 222], strides = [1, 1]} : vector<2x256xf32> to vector<2x222xf32>
    %c24 = arith.constant 24 : index
    %227 = memref.load %arg1[%c24] : memref<54xf32, #tpu.memory_space<smem>>
    %228 = vector.broadcast %227 : f32 to vector<2x222xf32>
    %229 = arith.mulf %228, %226 : vector<2x222xf32>
    %230 = arith.addf %221, %229 : vector<2x222xf32>
    %c51 = arith.constant 51 : index
    %231 = memref.load %arg1[%c51] : memref<54xf32, #tpu.memory_space<smem>>
    %232 = vector.broadcast %231 : f32 to vector<2x222xf32>
    %233 = arith.mulf %232, %226 : vector<2x222xf32>
    %234 = arith.addf %225, %233 : vector<2x222xf32>
    %235 = vector.extract_strided_slice %5 {offsets = [0, 33], sizes = [2, 222], strides = [1, 1]} : vector<2x256xf32> to vector<2x222xf32>
    %c25 = arith.constant 25 : index
    %236 = memref.load %arg1[%c25] : memref<54xf32, #tpu.memory_space<smem>>
    %237 = vector.broadcast %236 : f32 to vector<2x222xf32>
    %238 = arith.mulf %237, %235 : vector<2x222xf32>
    %239 = arith.addf %230, %238 : vector<2x222xf32>
    %c52 = arith.constant 52 : index
    %240 = memref.load %arg1[%c52] : memref<54xf32, #tpu.memory_space<smem>>
    %241 = vector.broadcast %240 : f32 to vector<2x222xf32>
    %242 = arith.mulf %241, %235 : vector<2x222xf32>
    %243 = arith.addf %234, %242 : vector<2x222xf32>
    %244 = vector.extract_strided_slice %5 {offsets = [0, 34], sizes = [2, 222], strides = [1, 1]} : vector<2x256xf32> to vector<2x222xf32>
    %c26 = arith.constant 26 : index
    %245 = memref.load %arg1[%c26] : memref<54xf32, #tpu.memory_space<smem>>
    %246 = vector.broadcast %245 : f32 to vector<2x222xf32>
    %247 = arith.mulf %246, %244 : vector<2x222xf32>
    %248 = arith.addf %239, %247 : vector<2x222xf32>
    %c53 = arith.constant 53 : index
    %249 = memref.load %arg1[%c53] : memref<54xf32, #tpu.memory_space<smem>>
    %250 = vector.broadcast %249 : f32 to vector<2x222xf32>
    %251 = arith.mulf %250, %244 : vector<2x222xf32>
    %252 = arith.addf %243, %251 : vector<2x222xf32>
    %c0_11 = arith.constant 0 : index
    %253 = memref.load %arg4[%c0_11] : memref<2xf32, #tpu.memory_space<smem>>
    %254 = vector.broadcast %253 : f32 to vector<2x188xf32>
    %c1_12 = arith.constant 1 : index
    %255 = memref.load %arg4[%c1_12] : memref<2xf32, #tpu.memory_space<smem>>
    %256 = vector.broadcast %255 : f32 to vector<2x188xf32>
    %257 = vector.extract_strided_slice %248 {offsets = [0, 0], sizes = [2, 188], strides = [1, 1]} : vector<2x222xf32> to vector<2x188xf32>
    %c0_13 = arith.constant 0 : index
    %258 = memref.load %arg3[%c0_13] : memref<36xf32, #tpu.memory_space<smem>>
    %259 = vector.broadcast %258 : f32 to vector<2x188xf32>
    %260 = arith.mulf %259, %257 : vector<2x188xf32>
    %261 = arith.addf %254, %260 : vector<2x188xf32>
    %c18_14 = arith.constant 18 : index
    %262 = memref.load %arg3[%c18_14] : memref<36xf32, #tpu.memory_space<smem>>
    %263 = vector.broadcast %262 : f32 to vector<2x188xf32>
    %264 = arith.mulf %263, %257 : vector<2x188xf32>
    %265 = arith.addf %256, %264 : vector<2x188xf32>
    %266 = vector.extract_strided_slice %248 {offsets = [0, 1], sizes = [2, 188], strides = [1, 1]} : vector<2x222xf32> to vector<2x188xf32>
    %c1_15 = arith.constant 1 : index
    %267 = memref.load %arg3[%c1_15] : memref<36xf32, #tpu.memory_space<smem>>
    %268 = vector.broadcast %267 : f32 to vector<2x188xf32>
    %269 = arith.mulf %268, %266 : vector<2x188xf32>
    %270 = arith.addf %261, %269 : vector<2x188xf32>
    %c19_16 = arith.constant 19 : index
    %271 = memref.load %arg3[%c19_16] : memref<36xf32, #tpu.memory_space<smem>>
    %272 = vector.broadcast %271 : f32 to vector<2x188xf32>
    %273 = arith.mulf %272, %266 : vector<2x188xf32>
    %274 = arith.addf %265, %273 : vector<2x188xf32>
    %275 = vector.extract_strided_slice %248 {offsets = [0, 2], sizes = [2, 188], strides = [1, 1]} : vector<2x222xf32> to vector<2x188xf32>
    %c2_17 = arith.constant 2 : index
    %276 = memref.load %arg3[%c2_17] : memref<36xf32, #tpu.memory_space<smem>>
    %277 = vector.broadcast %276 : f32 to vector<2x188xf32>
    %278 = arith.mulf %277, %275 : vector<2x188xf32>
    %279 = arith.addf %270, %278 : vector<2x188xf32>
    %c20_18 = arith.constant 20 : index
    %280 = memref.load %arg3[%c20_18] : memref<36xf32, #tpu.memory_space<smem>>
    %281 = vector.broadcast %280 : f32 to vector<2x188xf32>
    %282 = arith.mulf %281, %275 : vector<2x188xf32>
    %283 = arith.addf %274, %282 : vector<2x188xf32>
    %284 = vector.extract_strided_slice %248 {offsets = [0, 16], sizes = [2, 188], strides = [1, 1]} : vector<2x222xf32> to vector<2x188xf32>
    %c3_19 = arith.constant 3 : index
    %285 = memref.load %arg3[%c3_19] : memref<36xf32, #tpu.memory_space<smem>>
    %286 = vector.broadcast %285 : f32 to vector<2x188xf32>
    %287 = arith.mulf %286, %284 : vector<2x188xf32>
    %288 = arith.addf %279, %287 : vector<2x188xf32>
    %c21_20 = arith.constant 21 : index
    %289 = memref.load %arg3[%c21_20] : memref<36xf32, #tpu.memory_space<smem>>
    %290 = vector.broadcast %289 : f32 to vector<2x188xf32>
    %291 = arith.mulf %290, %284 : vector<2x188xf32>
    %292 = arith.addf %283, %291 : vector<2x188xf32>
    %293 = vector.extract_strided_slice %248 {offsets = [0, 17], sizes = [2, 188], strides = [1, 1]} : vector<2x222xf32> to vector<2x188xf32>
    %c4_21 = arith.constant 4 : index
    %294 = memref.load %arg3[%c4_21] : memref<36xf32, #tpu.memory_space<smem>>
    %295 = vector.broadcast %294 : f32 to vector<2x188xf32>
    %296 = arith.mulf %295, %293 : vector<2x188xf32>
    %297 = arith.addf %288, %296 : vector<2x188xf32>
    %c22_22 = arith.constant 22 : index
    %298 = memref.load %arg3[%c22_22] : memref<36xf32, #tpu.memory_space<smem>>
    %299 = vector.broadcast %298 : f32 to vector<2x188xf32>
    %300 = arith.mulf %299, %293 : vector<2x188xf32>
    %301 = arith.addf %292, %300 : vector<2x188xf32>
    %302 = vector.extract_strided_slice %248 {offsets = [0, 18], sizes = [2, 188], strides = [1, 1]} : vector<2x222xf32> to vector<2x188xf32>
    %c5_23 = arith.constant 5 : index
    %303 = memref.load %arg3[%c5_23] : memref<36xf32, #tpu.memory_space<smem>>
    %304 = vector.broadcast %303 : f32 to vector<2x188xf32>
    %305 = arith.mulf %304, %302 : vector<2x188xf32>
    %306 = arith.addf %297, %305 : vector<2x188xf32>
    %c23_24 = arith.constant 23 : index
    %307 = memref.load %arg3[%c23_24] : memref<36xf32, #tpu.memory_space<smem>>
    %308 = vector.broadcast %307 : f32 to vector<2x188xf32>
    %309 = arith.mulf %308, %302 : vector<2x188xf32>
    %310 = arith.addf %301, %309 : vector<2x188xf32>
    %311 = vector.extract_strided_slice %248 {offsets = [0, 32], sizes = [2, 188], strides = [1, 1]} : vector<2x222xf32> to vector<2x188xf32>
    %c6_25 = arith.constant 6 : index
    %312 = memref.load %arg3[%c6_25] : memref<36xf32, #tpu.memory_space<smem>>
    %313 = vector.broadcast %312 : f32 to vector<2x188xf32>
    %314 = arith.mulf %313, %311 : vector<2x188xf32>
    %315 = arith.addf %306, %314 : vector<2x188xf32>
    %c24_26 = arith.constant 24 : index
    %316 = memref.load %arg3[%c24_26] : memref<36xf32, #tpu.memory_space<smem>>
    %317 = vector.broadcast %316 : f32 to vector<2x188xf32>
    %318 = arith.mulf %317, %311 : vector<2x188xf32>
    %319 = arith.addf %310, %318 : vector<2x188xf32>
    %320 = vector.extract_strided_slice %248 {offsets = [0, 33], sizes = [2, 188], strides = [1, 1]} : vector<2x222xf32> to vector<2x188xf32>
    %c7_27 = arith.constant 7 : index
    %321 = memref.load %arg3[%c7_27] : memref<36xf32, #tpu.memory_space<smem>>
    %322 = vector.broadcast %321 : f32 to vector<2x188xf32>
    %323 = arith.mulf %322, %320 : vector<2x188xf32>
    %324 = arith.addf %315, %323 : vector<2x188xf32>
    %c25_28 = arith.constant 25 : index
    %325 = memref.load %arg3[%c25_28] : memref<36xf32, #tpu.memory_space<smem>>
    %326 = vector.broadcast %325 : f32 to vector<2x188xf32>
    %327 = arith.mulf %326, %320 : vector<2x188xf32>
    %328 = arith.addf %319, %327 : vector<2x188xf32>
    %329 = vector.extract_strided_slice %248 {offsets = [0, 34], sizes = [2, 188], strides = [1, 1]} : vector<2x222xf32> to vector<2x188xf32>
    %c8_29 = arith.constant 8 : index
    %330 = memref.load %arg3[%c8_29] : memref<36xf32, #tpu.memory_space<smem>>
    %331 = vector.broadcast %330 : f32 to vector<2x188xf32>
    %332 = arith.mulf %331, %329 : vector<2x188xf32>
    %333 = arith.addf %324, %332 : vector<2x188xf32>
    %c26_30 = arith.constant 26 : index
    %334 = memref.load %arg3[%c26_30] : memref<36xf32, #tpu.memory_space<smem>>
    %335 = vector.broadcast %334 : f32 to vector<2x188xf32>
    %336 = arith.mulf %335, %329 : vector<2x188xf32>
    %337 = arith.addf %328, %336 : vector<2x188xf32>
    %338 = vector.extract_strided_slice %252 {offsets = [0, 0], sizes = [2, 188], strides = [1, 1]} : vector<2x222xf32> to vector<2x188xf32>
    %c9_31 = arith.constant 9 : index
    %339 = memref.load %arg3[%c9_31] : memref<36xf32, #tpu.memory_space<smem>>
    %340 = vector.broadcast %339 : f32 to vector<2x188xf32>
    %341 = arith.mulf %340, %338 : vector<2x188xf32>
    %342 = arith.addf %333, %341 : vector<2x188xf32>
    %c27_32 = arith.constant 27 : index
    %343 = memref.load %arg3[%c27_32] : memref<36xf32, #tpu.memory_space<smem>>
    %344 = vector.broadcast %343 : f32 to vector<2x188xf32>
    %345 = arith.mulf %344, %338 : vector<2x188xf32>
    %346 = arith.addf %337, %345 : vector<2x188xf32>
    %347 = vector.extract_strided_slice %252 {offsets = [0, 1], sizes = [2, 188], strides = [1, 1]} : vector<2x222xf32> to vector<2x188xf32>
    %c10_33 = arith.constant 10 : index
    %348 = memref.load %arg3[%c10_33] : memref<36xf32, #tpu.memory_space<smem>>
    %349 = vector.broadcast %348 : f32 to vector<2x188xf32>
    %350 = arith.mulf %349, %347 : vector<2x188xf32>
    %351 = arith.addf %342, %350 : vector<2x188xf32>
    %c28_34 = arith.constant 28 : index
    %352 = memref.load %arg3[%c28_34] : memref<36xf32, #tpu.memory_space<smem>>
    %353 = vector.broadcast %352 : f32 to vector<2x188xf32>
    %354 = arith.mulf %353, %347 : vector<2x188xf32>
    %355 = arith.addf %346, %354 : vector<2x188xf32>
    %356 = vector.extract_strided_slice %252 {offsets = [0, 2], sizes = [2, 188], strides = [1, 1]} : vector<2x222xf32> to vector<2x188xf32>
    %c11_35 = arith.constant 11 : index
    %357 = memref.load %arg3[%c11_35] : memref<36xf32, #tpu.memory_space<smem>>
    %358 = vector.broadcast %357 : f32 to vector<2x188xf32>
    %359 = arith.mulf %358, %356 : vector<2x188xf32>
    %360 = arith.addf %351, %359 : vector<2x188xf32>
    %c29_36 = arith.constant 29 : index
    %361 = memref.load %arg3[%c29_36] : memref<36xf32, #tpu.memory_space<smem>>
    %362 = vector.broadcast %361 : f32 to vector<2x188xf32>
    %363 = arith.mulf %362, %356 : vector<2x188xf32>
    %364 = arith.addf %355, %363 : vector<2x188xf32>
    %365 = vector.extract_strided_slice %252 {offsets = [0, 16], sizes = [2, 188], strides = [1, 1]} : vector<2x222xf32> to vector<2x188xf32>
    %c12_37 = arith.constant 12 : index
    %366 = memref.load %arg3[%c12_37] : memref<36xf32, #tpu.memory_space<smem>>
    %367 = vector.broadcast %366 : f32 to vector<2x188xf32>
    %368 = arith.mulf %367, %365 : vector<2x188xf32>
    %369 = arith.addf %360, %368 : vector<2x188xf32>
    %c30_38 = arith.constant 30 : index
    %370 = memref.load %arg3[%c30_38] : memref<36xf32, #tpu.memory_space<smem>>
    %371 = vector.broadcast %370 : f32 to vector<2x188xf32>
    %372 = arith.mulf %371, %365 : vector<2x188xf32>
    %373 = arith.addf %364, %372 : vector<2x188xf32>
    %374 = vector.extract_strided_slice %252 {offsets = [0, 17], sizes = [2, 188], strides = [1, 1]} : vector<2x222xf32> to vector<2x188xf32>
    %c13_39 = arith.constant 13 : index
    %375 = memref.load %arg3[%c13_39] : memref<36xf32, #tpu.memory_space<smem>>
    %376 = vector.broadcast %375 : f32 to vector<2x188xf32>
    %377 = arith.mulf %376, %374 : vector<2x188xf32>
    %378 = arith.addf %369, %377 : vector<2x188xf32>
    %c31_40 = arith.constant 31 : index
    %379 = memref.load %arg3[%c31_40] : memref<36xf32, #tpu.memory_space<smem>>
    %380 = vector.broadcast %379 : f32 to vector<2x188xf32>
    %381 = arith.mulf %380, %374 : vector<2x188xf32>
    %382 = arith.addf %373, %381 : vector<2x188xf32>
    %383 = vector.extract_strided_slice %252 {offsets = [0, 18], sizes = [2, 188], strides = [1, 1]} : vector<2x222xf32> to vector<2x188xf32>
    %c14_41 = arith.constant 14 : index
    %384 = memref.load %arg3[%c14_41] : memref<36xf32, #tpu.memory_space<smem>>
    %385 = vector.broadcast %384 : f32 to vector<2x188xf32>
    %386 = arith.mulf %385, %383 : vector<2x188xf32>
    %387 = arith.addf %378, %386 : vector<2x188xf32>
    %c32_42 = arith.constant 32 : index
    %388 = memref.load %arg3[%c32_42] : memref<36xf32, #tpu.memory_space<smem>>
    %389 = vector.broadcast %388 : f32 to vector<2x188xf32>
    %390 = arith.mulf %389, %383 : vector<2x188xf32>
    %391 = arith.addf %382, %390 : vector<2x188xf32>
    %392 = vector.extract_strided_slice %252 {offsets = [0, 32], sizes = [2, 188], strides = [1, 1]} : vector<2x222xf32> to vector<2x188xf32>
    %c15_43 = arith.constant 15 : index
    %393 = memref.load %arg3[%c15_43] : memref<36xf32, #tpu.memory_space<smem>>
    %394 = vector.broadcast %393 : f32 to vector<2x188xf32>
    %395 = arith.mulf %394, %392 : vector<2x188xf32>
    %396 = arith.addf %387, %395 : vector<2x188xf32>
    %c33_44 = arith.constant 33 : index
    %397 = memref.load %arg3[%c33_44] : memref<36xf32, #tpu.memory_space<smem>>
    %398 = vector.broadcast %397 : f32 to vector<2x188xf32>
    %399 = arith.mulf %398, %392 : vector<2x188xf32>
    %400 = arith.addf %391, %399 : vector<2x188xf32>
    %401 = vector.extract_strided_slice %252 {offsets = [0, 33], sizes = [2, 188], strides = [1, 1]} : vector<2x222xf32> to vector<2x188xf32>
    %c16_45 = arith.constant 16 : index
    %402 = memref.load %arg3[%c16_45] : memref<36xf32, #tpu.memory_space<smem>>
    %403 = vector.broadcast %402 : f32 to vector<2x188xf32>
    %404 = arith.mulf %403, %401 : vector<2x188xf32>
    %405 = arith.addf %396, %404 : vector<2x188xf32>
    %c34_46 = arith.constant 34 : index
    %406 = memref.load %arg3[%c34_46] : memref<36xf32, #tpu.memory_space<smem>>
    %407 = vector.broadcast %406 : f32 to vector<2x188xf32>
    %408 = arith.mulf %407, %401 : vector<2x188xf32>
    %409 = arith.addf %400, %408 : vector<2x188xf32>
    %410 = vector.extract_strided_slice %252 {offsets = [0, 34], sizes = [2, 188], strides = [1, 1]} : vector<2x222xf32> to vector<2x188xf32>
    %c17_47 = arith.constant 17 : index
    %411 = memref.load %arg3[%c17_47] : memref<36xf32, #tpu.memory_space<smem>>
    %412 = vector.broadcast %411 : f32 to vector<2x188xf32>
    %413 = arith.mulf %412, %410 : vector<2x188xf32>
    %414 = arith.addf %405, %413 : vector<2x188xf32>
    %c35_48 = arith.constant 35 : index
    %415 = memref.load %arg3[%c35_48] : memref<36xf32, #tpu.memory_space<smem>>
    %416 = vector.broadcast %415 : f32 to vector<2x188xf32>
    %417 = arith.mulf %416, %410 : vector<2x188xf32>
    %418 = arith.addf %409, %417 : vector<2x188xf32>
    %c0_49 = arith.constant 0 : index
    %c0_50 = arith.constant 0 : index
    %c0_51 = arith.constant 0 : index
    %419 = vector.load %arg7[%c0_49, %c0_50, %c0_51] : memref<2x2x188xf32, #tpu.memory_space<vmem>>, vector<1x2x188xf32>
    %420 = vector.shape_cast %419 : vector<1x2x188xf32> to vector<2x188xf32>
    %421 = vector.shape_cast %414 : vector<2x188xf32> to vector<1x2x188xf32>
    tpu.vector_store %arg7[%c0_49, %c0_50, %c0_51], %421 {strides = array<i32>} : memref<2x2x188xf32, #tpu.memory_space<vmem>>, vector<1x2x188xf32>,
    %c1_52 = arith.constant 1 : index
    %c0_53 = arith.constant 0 : index
    %c0_54 = arith.constant 0 : index
    %422 = vector.load %arg7[%c1_52, %c0_53, %c0_54] : memref<2x2x188xf32, #tpu.memory_space<vmem>>, vector<1x2x188xf32>
    %423 = vector.shape_cast %422 : vector<1x2x188xf32> to vector<2x188xf32>
    %424 = vector.shape_cast %418 : vector<2x188xf32> to vector<1x2x188xf32>
    tpu.vector_store %arg7[%c1_52, %c0_53, %c0_54], %424 {strides = array<i32>} : memref<2x2x188xf32, #tpu.memory_space<vmem>>, vector<1x2x188xf32>,
    %c0_55 = arith.constant 0 : index
    %425 = memref.load %arg6[%c0_55] : memref<2xf32, #tpu.memory_space<smem>>
    %426 = vector.broadcast %425 : f32 to vector<2x154xf32>
    %c1_56 = arith.constant 1 : index
    %427 = memref.load %arg6[%c1_56] : memref<2xf32, #tpu.memory_space<smem>>
    %428 = vector.broadcast %427 : f32 to vector<2x154xf32>
    %429 = vector.extract_strided_slice %414 {offsets = [0, 0], sizes = [2, 154], strides = [1, 1]} : vector<2x188xf32> to vector<2x154xf32>
    %c0_57 = arith.constant 0 : index
    %430 = memref.load %arg5[%c0_57] : memref<36xf32, #tpu.memory_space<smem>>
    %431 = vector.broadcast %430 : f32 to vector<2x154xf32>
    %432 = arith.mulf %431, %429 : vector<2x154xf32>
    %433 = arith.addf %426, %432 : vector<2x154xf32>
    %c18_58 = arith.constant 18 : index
    %434 = memref.load %arg5[%c18_58] : memref<36xf32, #tpu.memory_space<smem>>
    %435 = vector.broadcast %434 : f32 to vector<2x154xf32>
    %436 = arith.mulf %435, %429 : vector<2x154xf32>
    %437 = arith.addf %428, %436 : vector<2x154xf32>
    %438 = vector.extract_strided_slice %414 {offsets = [0, 1], sizes = [2, 154], strides = [1, 1]} : vector<2x188xf32> to vector<2x154xf32>
    %c1_59 = arith.constant 1 : index
    %439 = memref.load %arg5[%c1_59] : memref<36xf32, #tpu.memory_space<smem>>
    %440 = vector.broadcast %439 : f32 to vector<2x154xf32>
    %441 = arith.mulf %440, %438 : vector<2x154xf32>
    %442 = arith.addf %433, %441 : vector<2x154xf32>
    %c19_60 = arith.constant 19 : index
    %443 = memref.load %arg5[%c19_60] : memref<36xf32, #tpu.memory_space<smem>>
    %444 = vector.broadcast %443 : f32 to vector<2x154xf32>
    %445 = arith.mulf %444, %438 : vector<2x154xf32>
    %446 = arith.addf %437, %445 : vector<2x154xf32>
    %447 = vector.extract_strided_slice %414 {offsets = [0, 2], sizes = [2, 154], strides = [1, 1]} : vector<2x188xf32> to vector<2x154xf32>
    %c2_61 = arith.constant 2 : index
    %448 = memref.load %arg5[%c2_61] : memref<36xf32, #tpu.memory_space<smem>>
    %449 = vector.broadcast %448 : f32 to vector<2x154xf32>
    %450 = arith.mulf %449, %447 : vector<2x154xf32>
    %451 = arith.addf %442, %450 : vector<2x154xf32>
    %c20_62 = arith.constant 20 : index
    %452 = memref.load %arg5[%c20_62] : memref<36xf32, #tpu.memory_space<smem>>
    %453 = vector.broadcast %452 : f32 to vector<2x154xf32>
    %454 = arith.mulf %453, %447 : vector<2x154xf32>
    %455 = arith.addf %446, %454 : vector<2x154xf32>
    %456 = vector.extract_strided_slice %414 {offsets = [0, 16], sizes = [2, 154], strides = [1, 1]} : vector<2x188xf32> to vector<2x154xf32>
    %c3_63 = arith.constant 3 : index
    %457 = memref.load %arg5[%c3_63] : memref<36xf32, #tpu.memory_space<smem>>
    %458 = vector.broadcast %457 : f32 to vector<2x154xf32>
    %459 = arith.mulf %458, %456 : vector<2x154xf32>
    %460 = arith.addf %451, %459 : vector<2x154xf32>
    %c21_64 = arith.constant 21 : index
    %461 = memref.load %arg5[%c21_64] : memref<36xf32, #tpu.memory_space<smem>>
    %462 = vector.broadcast %461 : f32 to vector<2x154xf32>
    %463 = arith.mulf %462, %456 : vector<2x154xf32>
    %464 = arith.addf %455, %463 : vector<2x154xf32>
    %465 = vector.extract_strided_slice %414 {offsets = [0, 17], sizes = [2, 154], strides = [1, 1]} : vector<2x188xf32> to vector<2x154xf32>
    %c4_65 = arith.constant 4 : index
    %466 = memref.load %arg5[%c4_65] : memref<36xf32, #tpu.memory_space<smem>>
    %467 = vector.broadcast %466 : f32 to vector<2x154xf32>
    %468 = arith.mulf %467, %465 : vector<2x154xf32>
    %469 = arith.addf %460, %468 : vector<2x154xf32>
    %c22_66 = arith.constant 22 : index
    %470 = memref.load %arg5[%c22_66] : memref<36xf32, #tpu.memory_space<smem>>
    %471 = vector.broadcast %470 : f32 to vector<2x154xf32>
    %472 = arith.mulf %471, %465 : vector<2x154xf32>
    %473 = arith.addf %464, %472 : vector<2x154xf32>
    %474 = vector.extract_strided_slice %414 {offsets = [0, 18], sizes = [2, 154], strides = [1, 1]} : vector<2x188xf32> to vector<2x154xf32>
    %c5_67 = arith.constant 5 : index
    %475 = memref.load %arg5[%c5_67] : memref<36xf32, #tpu.memory_space<smem>>
    %476 = vector.broadcast %475 : f32 to vector<2x154xf32>
    %477 = arith.mulf %476, %474 : vector<2x154xf32>
    %478 = arith.addf %469, %477 : vector<2x154xf32>
    %c23_68 = arith.constant 23 : index
    %479 = memref.load %arg5[%c23_68] : memref<36xf32, #tpu.memory_space<smem>>
    %480 = vector.broadcast %479 : f32 to vector<2x154xf32>
    %481 = arith.mulf %480, %474 : vector<2x154xf32>
    %482 = arith.addf %473, %481 : vector<2x154xf32>
    %483 = vector.extract_strided_slice %414 {offsets = [0, 32], sizes = [2, 154], strides = [1, 1]} : vector<2x188xf32> to vector<2x154xf32>
    %c6_69 = arith.constant 6 : index
    %484 = memref.load %arg5[%c6_69] : memref<36xf32, #tpu.memory_space<smem>>
    %485 = vector.broadcast %484 : f32 to vector<2x154xf32>
    %486 = arith.mulf %485, %483 : vector<2x154xf32>
    %487 = arith.addf %478, %486 : vector<2x154xf32>
    %c24_70 = arith.constant 24 : index
    %488 = memref.load %arg5[%c24_70] : memref<36xf32, #tpu.memory_space<smem>>
    %489 = vector.broadcast %488 : f32 to vector<2x154xf32>
    %490 = arith.mulf %489, %483 : vector<2x154xf32>
    %491 = arith.addf %482, %490 : vector<2x154xf32>
    %492 = vector.extract_strided_slice %414 {offsets = [0, 33], sizes = [2, 154], strides = [1, 1]} : vector<2x188xf32> to vector<2x154xf32>
    %c7_71 = arith.constant 7 : index
    %493 = memref.load %arg5[%c7_71] : memref<36xf32, #tpu.memory_space<smem>>
    %494 = vector.broadcast %493 : f32 to vector<2x154xf32>
    %495 = arith.mulf %494, %492 : vector<2x154xf32>
    %496 = arith.addf %487, %495 : vector<2x154xf32>
    %c25_72 = arith.constant 25 : index
    %497 = memref.load %arg5[%c25_72] : memref<36xf32, #tpu.memory_space<smem>>
    %498 = vector.broadcast %497 : f32 to vector<2x154xf32>
    %499 = arith.mulf %498, %492 : vector<2x154xf32>
    %500 = arith.addf %491, %499 : vector<2x154xf32>
    %501 = vector.extract_strided_slice %414 {offsets = [0, 34], sizes = [2, 154], strides = [1, 1]} : vector<2x188xf32> to vector<2x154xf32>
    %c8_73 = arith.constant 8 : index
    %502 = memref.load %arg5[%c8_73] : memref<36xf32, #tpu.memory_space<smem>>
    %503 = vector.broadcast %502 : f32 to vector<2x154xf32>
    %504 = arith.mulf %503, %501 : vector<2x154xf32>
    %505 = arith.addf %496, %504 : vector<2x154xf32>
    %c26_74 = arith.constant 26 : index
    %506 = memref.load %arg5[%c26_74] : memref<36xf32, #tpu.memory_space<smem>>
    %507 = vector.broadcast %506 : f32 to vector<2x154xf32>
    %508 = arith.mulf %507, %501 : vector<2x154xf32>
    %509 = arith.addf %500, %508 : vector<2x154xf32>
    %510 = vector.extract_strided_slice %418 {offsets = [0, 0], sizes = [2, 154], strides = [1, 1]} : vector<2x188xf32> to vector<2x154xf32>
    %c9_75 = arith.constant 9 : index
    %511 = memref.load %arg5[%c9_75] : memref<36xf32, #tpu.memory_space<smem>>
    %512 = vector.broadcast %511 : f32 to vector<2x154xf32>
    %513 = arith.mulf %512, %510 : vector<2x154xf32>
    %514 = arith.addf %505, %513 : vector<2x154xf32>
    %c27_76 = arith.constant 27 : index
    %515 = memref.load %arg5[%c27_76] : memref<36xf32, #tpu.memory_space<smem>>
    %516 = vector.broadcast %515 : f32 to vector<2x154xf32>
    %517 = arith.mulf %516, %510 : vector<2x154xf32>
    %518 = arith.addf %509, %517 : vector<2x154xf32>
    %519 = vector.extract_strided_slice %418 {offsets = [0, 1], sizes = [2, 154], strides = [1, 1]} : vector<2x188xf32> to vector<2x154xf32>
    %c10_77 = arith.constant 10 : index
    %520 = memref.load %arg5[%c10_77] : memref<36xf32, #tpu.memory_space<smem>>
    %521 = vector.broadcast %520 : f32 to vector<2x154xf32>
    %522 = arith.mulf %521, %519 : vector<2x154xf32>
    %523 = arith.addf %514, %522 : vector<2x154xf32>
    %c28_78 = arith.constant 28 : index
    %524 = memref.load %arg5[%c28_78] : memref<36xf32, #tpu.memory_space<smem>>
    %525 = vector.broadcast %524 : f32 to vector<2x154xf32>
    %526 = arith.mulf %525, %519 : vector<2x154xf32>
    %527 = arith.addf %518, %526 : vector<2x154xf32>
    %528 = vector.extract_strided_slice %418 {offsets = [0, 2], sizes = [2, 154], strides = [1, 1]} : vector<2x188xf32> to vector<2x154xf32>
    %c11_79 = arith.constant 11 : index
    %529 = memref.load %arg5[%c11_79] : memref<36xf32, #tpu.memory_space<smem>>
    %530 = vector.broadcast %529 : f32 to vector<2x154xf32>
    %531 = arith.mulf %530, %528 : vector<2x154xf32>
    %532 = arith.addf %523, %531 : vector<2x154xf32>
    %c29_80 = arith.constant 29 : index
    %533 = memref.load %arg5[%c29_80] : memref<36xf32, #tpu.memory_space<smem>>
    %534 = vector.broadcast %533 : f32 to vector<2x154xf32>
    %535 = arith.mulf %534, %528 : vector<2x154xf32>
    %536 = arith.addf %527, %535 : vector<2x154xf32>
    %537 = vector.extract_strided_slice %418 {offsets = [0, 16], sizes = [2, 154], strides = [1, 1]} : vector<2x188xf32> to vector<2x154xf32>
    %c12_81 = arith.constant 12 : index
    %538 = memref.load %arg5[%c12_81] : memref<36xf32, #tpu.memory_space<smem>>
    %539 = vector.broadcast %538 : f32 to vector<2x154xf32>
    %540 = arith.mulf %539, %537 : vector<2x154xf32>
    %541 = arith.addf %532, %540 : vector<2x154xf32>
    %c30_82 = arith.constant 30 : index
    %542 = memref.load %arg5[%c30_82] : memref<36xf32, #tpu.memory_space<smem>>
    %543 = vector.broadcast %542 : f32 to vector<2x154xf32>
    %544 = arith.mulf %543, %537 : vector<2x154xf32>
    %545 = arith.addf %536, %544 : vector<2x154xf32>
    %546 = vector.extract_strided_slice %418 {offsets = [0, 17], sizes = [2, 154], strides = [1, 1]} : vector<2x188xf32> to vector<2x154xf32>
    %c13_83 = arith.constant 13 : index
    %547 = memref.load %arg5[%c13_83] : memref<36xf32, #tpu.memory_space<smem>>
    %548 = vector.broadcast %547 : f32 to vector<2x154xf32>
    %549 = arith.mulf %548, %546 : vector<2x154xf32>
    %550 = arith.addf %541, %549 : vector<2x154xf32>
    %c31_84 = arith.constant 31 : index
    %551 = memref.load %arg5[%c31_84] : memref<36xf32, #tpu.memory_space<smem>>
    %552 = vector.broadcast %551 : f32 to vector<2x154xf32>
    %553 = arith.mulf %552, %546 : vector<2x154xf32>
    %554 = arith.addf %545, %553 : vector<2x154xf32>
    %555 = vector.extract_strided_slice %418 {offsets = [0, 18], sizes = [2, 154], strides = [1, 1]} : vector<2x188xf32> to vector<2x154xf32>
    %c14_85 = arith.constant 14 : index
    %556 = memref.load %arg5[%c14_85] : memref<36xf32, #tpu.memory_space<smem>>
    %557 = vector.broadcast %556 : f32 to vector<2x154xf32>
    %558 = arith.mulf %557, %555 : vector<2x154xf32>
    %559 = arith.addf %550, %558 : vector<2x154xf32>
    %c32_86 = arith.constant 32 : index
    %560 = memref.load %arg5[%c32_86] : memref<36xf32, #tpu.memory_space<smem>>
    %561 = vector.broadcast %560 : f32 to vector<2x154xf32>
    %562 = arith.mulf %561, %555 : vector<2x154xf32>
    %563 = arith.addf %554, %562 : vector<2x154xf32>
    %564 = vector.extract_strided_slice %418 {offsets = [0, 32], sizes = [2, 154], strides = [1, 1]} : vector<2x188xf32> to vector<2x154xf32>
    %c15_87 = arith.constant 15 : index
    %565 = memref.load %arg5[%c15_87] : memref<36xf32, #tpu.memory_space<smem>>
    %566 = vector.broadcast %565 : f32 to vector<2x154xf32>
    %567 = arith.mulf %566, %564 : vector<2x154xf32>
    %568 = arith.addf %559, %567 : vector<2x154xf32>
    %c33_88 = arith.constant 33 : index
    %569 = memref.load %arg5[%c33_88] : memref<36xf32, #tpu.memory_space<smem>>
    %570 = vector.broadcast %569 : f32 to vector<2x154xf32>
    %571 = arith.mulf %570, %564 : vector<2x154xf32>
    %572 = arith.addf %563, %571 : vector<2x154xf32>
    %573 = vector.extract_strided_slice %418 {offsets = [0, 33], sizes = [2, 154], strides = [1, 1]} : vector<2x188xf32> to vector<2x154xf32>
    %c16_89 = arith.constant 16 : index
    %574 = memref.load %arg5[%c16_89] : memref<36xf32, #tpu.memory_space<smem>>
    %575 = vector.broadcast %574 : f32 to vector<2x154xf32>
    %576 = arith.mulf %575, %573 : vector<2x154xf32>
    %577 = arith.addf %568, %576 : vector<2x154xf32>
    %c34_90 = arith.constant 34 : index
    %578 = memref.load %arg5[%c34_90] : memref<36xf32, #tpu.memory_space<smem>>
    %579 = vector.broadcast %578 : f32 to vector<2x154xf32>
    %580 = arith.mulf %579, %573 : vector<2x154xf32>
    %581 = arith.addf %572, %580 : vector<2x154xf32>
    %582 = vector.extract_strided_slice %418 {offsets = [0, 34], sizes = [2, 154], strides = [1, 1]} : vector<2x188xf32> to vector<2x154xf32>
    %c17_91 = arith.constant 17 : index
    %583 = memref.load %arg5[%c17_91] : memref<36xf32, #tpu.memory_space<smem>>
    %584 = vector.broadcast %583 : f32 to vector<2x154xf32>
    %585 = arith.mulf %584, %582 : vector<2x154xf32>
    %586 = arith.addf %577, %585 : vector<2x154xf32>
    %c35_92 = arith.constant 35 : index
    %587 = memref.load %arg5[%c35_92] : memref<36xf32, #tpu.memory_space<smem>>
    %588 = vector.broadcast %587 : f32 to vector<2x154xf32>
    %589 = arith.mulf %588, %582 : vector<2x154xf32>
    %590 = arith.addf %581, %589 : vector<2x154xf32>
    %c0_93 = arith.constant 0 : index
    %c0_94 = arith.constant 0 : index
    %c0_95 = arith.constant 0 : index
    %591 = vector.load %arg8[%c0_93, %c0_94, %c0_95] : memref<2x2x154xf32, #tpu.memory_space<vmem>>, vector<1x2x154xf32>
    %592 = vector.shape_cast %591 : vector<1x2x154xf32> to vector<2x154xf32>
    %593 = vector.shape_cast %586 : vector<2x154xf32> to vector<1x2x154xf32>
    tpu.vector_store %arg8[%c0_93, %c0_94, %c0_95], %593 {strides = array<i32>} : memref<2x2x154xf32, #tpu.memory_space<vmem>>, vector<1x2x154xf32>,
    %c1_96 = arith.constant 1 : index
    %c0_97 = arith.constant 0 : index
    %c0_98 = arith.constant 0 : index
    %594 = vector.load %arg8[%c1_96, %c0_97, %c0_98] : memref<2x2x154xf32, #tpu.memory_space<vmem>>, vector<1x2x154xf32>
    %595 = vector.shape_cast %594 : vector<1x2x154xf32> to vector<2x154xf32>
    %596 = vector.shape_cast %590 : vector<2x154xf32> to vector<1x2x154xf32>
    tpu.vector_store %arg8[%c1_96, %c0_97, %c0_98], %596 {strides = array<i32>} : memref<2x2x154xf32, #tpu.memory_space<vmem>>, vector<1x2x154xf32>,
    return
  }
}

</mosaic_0001>

<llo_original>
// kernel: model_forward.1
$region0: #{model_forward.1}
  #allocation0 [shape = 'u32[]', space=smem, size = 0x4, offset = 0x4, fixed_abs, tag = 'smem constant byte address 0x4 - core index']
  #allocation1 [shape = 'u32[144,128]{1,0:T(1,128)}', space=vmem, size = 0x12000, scoped, tag = 'internal scratch']
  %s0 = inlined_call_operand.vmem [shape: f32[3,2,256], index: 0, kind: input, shape index: {}]
  %s1 = inlined_call_operand.vmem [shape: f32[54], index: 1, kind: input, shape index: {}]
  %s2 = inlined_call_operand.vmem [shape: f32[2], index: 2, kind: input, shape index: {}]
  %s3 = inlined_call_operand.vmem [shape: f32[36], index: 3, kind: input, shape index: {}]
  %s4 = inlined_call_operand.vmem [shape: f32[2], index: 4, kind: input, shape index: {}]
  %s5 = inlined_call_operand.vmem [shape: f32[36], index: 5, kind: input, shape index: {}]
  %s6 = inlined_call_operand.vmem [shape: f32[2], index: 6, kind: input, shape index: {}]
  %s7 = inlined_call_operand.vmem [shape: f32[2,2,188], index: 7, kind: output, shape index: {0}]
  %s8 = inlined_call_operand.vmem [shape: f32[2,2,154], index: 8, kind: output, shape index: {1}]
  %9 = xla_tuple %s7, %s8
  %s10 = sld [smem:[#allocation0]]
  $region70: #{model_forward.1} parent=0
    _
  %s12 = ssub.s32 1, %s10
  %s13 = scalar_select 0, %s12, %s10
  $region1: #{model_forward.1} parent=0
    #allocation2 [shape = 'u8[512]{0}', space=smem, size = 0x200, scoped, tag = 'input window, operand 1, single buffered']
    #allocation3 [shape = 's32[1]{0}', space=sflag, size = 0x4, scoped, tag = 'scoped memory for model_forward.1']
    #allocation4 [shape = 'u8[512]{0}', space=smem, size = 0x200, scoped, tag = 'input window, operand 2, single buffered']
    #allocation5 [shape = 's32[1]{0}', space=sflag, size = 0x4, scoped, tag = 'scoped memory for model_forward.1']
    #allocation6 [shape = 'u8[512]{0}', space=smem, size = 0x200, scoped, tag = 'input window, operand 3, single buffered']
    #allocation7 [shape = 'u8[512]{0}', space=smem, size = 0x200, scoped, tag = 'input window, operand 4, single buffered']
    #allocation8 [shape = 's32[1]{0}', space=sflag, size = 0x4, scoped, tag = 'scoped memory for model_forward.1']
    #allocation9 [shape = 'u8[512]{0}', space=smem, size = 0x200, scoped, tag = 'input window, operand 5, single buffered']
    #allocation10 [shape = 'u8[512]{0}', space=smem, size = 0x200, scoped, tag = 'input window, operand 6, single buffered']
    #allocation11 [shape = 's32[1]{0}', space=sflag, size = 0x4, scoped, tag = 'scoped memory for model_forward.1']
    %14 = vsyncpa [#allocation3], 0
    %15 = vsyncpa [#allocation5], 0
    %16 = vsyncpa [#allocation8], 0
    %17 = vsyncpa [#allocation11], 0
    // Predicated region
    $region2: #{model_forward.1} parent=1 // pred_check
      _
    $region3: #{model_forward.1} parent=1 // pred_check_branch
      %19 = sbr.rel (0) target = $region5
    $region4: #{model_forward.1} parent=1 // pred_region
      _
    $region5: #{model_forward.1} parent=1 // pred_fallthru
      _
    // Predicated region
    $region6: #{model_forward.1} parent=1 // pred_check
      _
    $region7: #{model_forward.1} parent=1 // pred_check_branch
      %21 = sbr.rel (0) target = $region9
    $region8: #{model_forward.1} parent=1 // pred_region
      %s23 = ssub.s32 16, 16
      %24 = vsyncadd [#allocation3], %s23
      %s26 = sshll.u32 %s1, 4
      %s27 = int_to_ptr.vmem [resolvable:$true] %s26
      %29 = dma.vmem_to_smem %s27, 16, [#allocation2], [#allocation3]
    $region9: #{model_forward.1} parent=1 // pred_fallthru
      _
    // Predicated region
    $region10: #{model_forward.1} parent=1 // pred_check
      _
    $region11: #{model_forward.1} parent=1 // pred_check_branch
      %31 = sbr.rel (0) target = $region13
    $region12: #{model_forward.1} parent=1 // pred_region
      %s33 = ssub.s32 16, 16
      %34 = vsyncadd [#allocation5], %s33
      %s36 = sshll.u32 %s2, 4
      %s37 = int_to_ptr.vmem [resolvable:$true] %s36
      %39 = dma.vmem_to_smem %s37, 16, [#allocation4], [#allocation5]
    $region13: #{model_forward.1} parent=1 // pred_fallthru
      _
    // Predicated region
    $region14: #{model_forward.1} parent=1 // pred_check
      _
    $region15: #{model_forward.1} parent=1 // pred_check_branch
      %41 = sbr.rel (0) target = $region17
    $region16: #{model_forward.1} parent=1 // pred_region
      %s43 = ssub.s32 16, 16
      %44 = vsyncadd [#allocation5], %s43
      %s46 = sshll.u32 %s3, 4
      %s47 = int_to_ptr.vmem [resolvable:$true] %s46
      %49 = dma.vmem_to_smem %s47, 16, [#allocation6], [#allocation5]
    $region17: #{model_forward.1} parent=1 // pred_fallthru
      _
    // Predicated region
    $region18: #{model_forward.1} parent=1 // pred_check
      _
    $region19: #{model_forward.1} parent=1 // pred_check_branch
      %51 = sbr.rel (0) target = $region21
    $region20: #{model_forward.1} parent=1 // pred_region
      %s53 = ssub.s32 16, 16
      %54 = vsyncadd [#allocation8], %s53
      %s56 = sshll.u32 %s4, 4
      %s57 = int_to_ptr.vmem [resolvable:$true] %s56
      %59 = dma.vmem_to_smem %s57, 16, [#allocation7], [#allocation8]
    $region21: #{model_forward.1} parent=1 // pred_fallthru
      _
    // Predicated region
    $region22: #{model_forward.1} parent=1 // pred_check
      _
    $region23: #{model_forward.1} parent=1 // pred_check_branch
      %61 = sbr.rel (0) target = $region25
    $region24: #{model_forward.1} parent=1 // pred_region
      %s63 = ssub.s32 16, 16
      %64 = vsyncadd [#allocation8], %s63
      %s66 = sshll.u32 %s5, 4
      %s67 = int_to_ptr.vmem [resolvable:$true] %s66
      %69 = dma.vmem_to_smem %s67, 16, [#allocation9], [#allocation8]
    $region25: #{model_forward.1} parent=1 // pred_fallthru
      _
    // Predicated region
    $region26: #{model_forward.1} parent=1 // pred_check
      _
    $region27: #{model_forward.1} parent=1 // pred_check_branch
      %71 = sbr.rel (0) target = $region29
    $region28: #{model_forward.1} parent=1 // pred_region
      %s73 = ssub.s32 16, 16
      %74 = vsyncadd [#allocation11], %s73
      %s76 = sshll.u32 %s6, 4
      %s77 = int_to_ptr.vmem [resolvable:$true] %s76
      %79 = dma.vmem_to_smem %s77, 16, [#allocation10], [#allocation11]
    $region29: #{model_forward.1} parent=1 // pred_fallthru
      _
    // Predicated region
    $region30: #{model_forward.1} parent=1 // pred_check
      _
    $region31: #{model_forward.1} parent=1 // pred_check_branch
      %81 = sbr.rel (0) target = $region33
    $region32: #{model_forward.1} parent=1 // pred_region
      %82 = dma.done [#allocation3], 16
    $region33: #{model_forward.1} parent=1 // pred_fallthru
      _
    // Predicated region
    $region34: #{model_forward.1} parent=1 // pred_check
      _
    $region35: #{model_forward.1} parent=1 // pred_check_branch
      %84 = sbr.rel (0) target = $region37
    $region36: #{model_forward.1} parent=1 // pred_region
      %85 = dma.done [#allocation5], 16
    $region37: #{model_forward.1} parent=1 // pred_fallthru
      _
    // Predicated region
    $region38: #{model_forward.1} parent=1 // pred_check
      _
    $region39: #{model_forward.1} parent=1 // pred_check_branch
      %87 = sbr.rel (0) target = $region41
    $region40: #{model_forward.1} parent=1 // pred_region
      %88 = dma.done [#allocation5], 16
    $region41: #{model_forward.1} parent=1 // pred_fallthru
      _
    // Predicated region
    $region42: #{model_forward.1} parent=1 // pred_check
      _
    $region43: #{model_forward.1} parent=1 // pred_check_branch
      %90 = sbr.rel (0) target = $region45
    $region44: #{model_forward.1} parent=1 // pred_region
      %91 = dma.done [#allocation8], 16
    $region45: #{model_forward.1} parent=1 // pred_fallthru
      _
    // Predicated region
    $region46: #{model_forward.1} parent=1 // pred_check
      _
    $region47: #{model_forward.1} parent=1 // pred_check_branch
      %93 = sbr.rel (0) target = $region49
    $region48: #{model_forward.1} parent=1 // pred_region
      %94 = dma.done [#allocation8], 16
    $region49: #{model_forward.1} parent=1 // pred_fallthru
      _
    // Predicated region
    $region50: #{model_forward.1} parent=1 // pred_check
      _
    $region51: #{model_forward.1} parent=1 // pred_check_branch
      %96 = sbr.rel (0) target = $region53
    $region52: #{model_forward.1} parent=1 // pred_region
      %97 = dma.done [#allocation11], 16
    $region53: #{model_forward.1} parent=1 // pred_fallthru
      _
    %98 = sfence
    %v99 = vld [vmem:[%s0] sm:$0xf]
    %s100 = scalar_lea.vmem %s0, 4
    %v101 = vld [vmem:[%s100] sm:$0xf]
    %s102 = scalar_lea.vmem %s0, 8
    %v103 = vld [vmem:[%s102] sm:$0xf]
    %s104 = sld [smem:[#allocation4]]
    %v105 = vstv %s104
    %s106 = sld [smem:[#allocation4 + $0x1]]
    %v107 = vstv %s106
    %s108 = sld [smem:[#allocation2]]
    %v109 = vstv %s108
    %v110 = vmul.f32 %v109, %v99
    %v111 = vadd.f32 %v105, %v110
    %s112 = sld [smem:[#allocation2 + $0x1b]]
    %v113 = vstv %s112
    %v114 = vmul.f32 %v113, %v99
    %v115 = vadd.f32 %v107, %v114
    %s116 = sld [smem:[#allocation2 + $0x1]]
    %v117 = vstv %s116
    %v118 = vmul.f32 %v117, %v99
    %120 = vrot.lane.b32.xlu0 %v118, 127
    %v121 = vpop.permute.xlu0 %120
    %v122 = vrot.slane %v121, 2
    %vm123 = vcmask 1039360
    %v124 = vsel %vm123, %v121, %v122
    %v126 = vadd.f32 %v111, %v124
    %s127 = sld [smem:[#allocation2 + $0x1c]]
    %v128 = vstv %s127
    %v129 = vmul.f32 %v128, %v99
    %131 = vrot.lane.b32.xlu0 %v129, 127
    %v132 = vpop.permute.xlu0 %131
    %v133 = vrot.slane %v132, 2
    %v134 = vsel %vm123, %v132, %v133
    %v136 = vadd.f32 %v115, %v134
    %s137 = sld [smem:[#allocation2 + $0x2]]
    %v138 = vstv %s137
    %v139 = vmul.f32 %v138, %v99
    %141 = vrot.lane.b32.xlu0 %v139, 126
    %v142 = vpop.permute.xlu0 %141
    %v143 = vrot.slane %v142, 2
    %vm144 = vcmask 1031168
    %v145 = vsel %vm144, %v142, %v143
    %v147 = vadd.f32 %v126, %v145
    %s148 = sld [smem:[#allocation2 + $0x1d]]
    %v149 = vstv %s148
    %v150 = vmul.f32 %v149, %v99
    %152 = vrot.lane.b32.xlu0 %v150, 126
    %v153 = vpop.permute.xlu0 %152
    %v154 = vrot.slane %v153, 2
    %v155 = vsel %vm144, %v153, %v154
    %v157 = vadd.f32 %v136, %v155
    %s158 = sld [smem:[#allocation2 + $0x3]]
    %v159 = vstv %s158
    %v160 = vmul.f32 %v159, %v99
    %162 = vrot.lane.b32.xlu0 %v160, 112
    %v163 = vpop.permute.xlu0 %162
    %v164 = vrot.slane %v163, 2
    %vm165 = vcmask 916480
    %v166 = vsel %vm165, %v163, %v164
    %v168 = vadd.f32 %v147, %v166
    %s169 = sld [smem:[#allocation2 + $0x1e]]
    %v170 = vstv %s169
    %v171 = vmul.f32 %v170, %v99
    %173 = vrot.lane.b32.xlu0 %v171, 112
    %v174 = vpop.permute.xlu0 %173
    %v175 = vrot.slane %v174, 2
    %v176 = vsel %vm165, %v174, %v175
    %v178 = vadd.f32 %v157, %v176
    %s179 = sld [smem:[#allocation2 + $0x4]]
    %v180 = vstv %s179
    %v181 = vmul.f32 %v180, %v99
    %183 = vrot.lane.b32.xlu0 %v181, 111
    %v184 = vpop.permute.xlu0 %183
    %v185 = vrot.slane %v184, 2
    %vm186 = vcmask 908288
    %v187 = vsel %vm186, %v184, %v185
    %v189 = vadd.f32 %v168, %v187
    %s190 = sld [smem:[#allocation2 + $0x1f]]
    %v191 = vstv %s190
    %v192 = vmul.f32 %v191, %v99
    %194 = vrot.lane.b32.xlu0 %v192, 111
    %v195 = vpop.permute.xlu0 %194
    %v196 = vrot.slane %v195, 2
    %v197 = vsel %vm186, %v195, %v196
    %v199 = vadd.f32 %v178, %v197
    %s200 = sld [smem:[#allocation2 + $0x5]]
    %v201 = vstv %s200
    %v202 = vmul.f32 %v201, %v99
    %204 = vrot.lane.b32.xlu0 %v202, 110
    %v205 = vpop.permute.xlu0 %204
    %v206 = vrot.slane %v205, 2
    %vm207 = vcmask 900096
    %v208 = vsel %vm207, %v205, %v206
    %v210 = vadd.f32 %v189, %v208
    %s211 = sld [smem:[#allocation2 + $0x20]]
    %v212 = vstv %s211
    %v213 = vmul.f32 %v212, %v99
    %215 = vrot.lane.b32.xlu0 %v213, 110
    %v216 = vpop.permute.xlu0 %215
    %v217 = vrot.slane %v216, 2
    %v218 = vsel %vm207, %v216, %v217
    %v220 = vadd.f32 %v199, %v218
    %s221 = sld [smem:[#allocation2 + $0x6]]
    %v222 = vstv %s221
    %v223 = vmul.f32 %v222, %v99
    %225 = vrot.lane.b32.xlu0 %v223, 96
    %v226 = vpop.permute.xlu0 %225
    %v227 = vrot.slane %v226, 2
    %vm228 = vcmask 785408
    %v229 = vsel %vm228, %v226, %v227
    %v231 = vadd.f32 %v210, %v229
    %s232 = sld [smem:[#allocation2 + $0x21]]
    %v233 = vstv %s232
    %v234 = vmul.f32 %v233, %v99
    %236 = vrot.lane.b32.xlu0 %v234, 96
    %v237 = vpop.permute.xlu0 %236
    %v238 = vrot.slane %v237, 2
    %v239 = vsel %vm228, %v237, %v238
    %v241 = vadd.f32 %v220, %v239
    %s242 = sld [smem:[#allocation2 + $0x7]]
    %v243 = vstv %s242
    %v244 = vmul.f32 %v243, %v99
    %246 = vrot.lane.b32.xlu0 %v244, 95
    %v247 = vpop.permute.xlu0 %246
    %v248 = vrot.slane %v247, 2
    %vm249 = vcmask 777216
    %v250 = vsel %vm249, %v247, %v248
    %v252 = vadd.f32 %v231, %v250
    %s253 = sld [smem:[#allocation2 + $0x22]]
    %v254 = vstv %s253
    %v255 = vmul.f32 %v254, %v99
    %257 = vrot.lane.b32.xlu0 %v255, 95
    %v258 = vpop.permute.xlu0 %257
    %v259 = vrot.slane %v258, 2
    %v260 = vsel %vm249, %v258, %v259
    %v262 = vadd.f32 %v241, %v260
    %s263 = sld [smem:[#allocation2 + $0x8]]
    %v264 = vstv %s263
    %v265 = vmul.f32 %v264, %v99
    %267 = vrot.lane.b32.xlu0 %v265, 94
    %v268 = vpop.permute.xlu0 %267
    %v269 = vrot.slane %v268, 2
    %vm270 = vcmask 769024
    %v271 = vsel %vm270, %v268, %v269
    %v273 = vadd.f32 %v252, %v271
    %s274 = sld [smem:[#allocation2 + $0x23]]
    %v275 = vstv %s274
    %v276 = vmul.f32 %v275, %v99
    %278 = vrot.lane.b32.xlu0 %v276, 94
    %v279 = vpop.permute.xlu0 %278
    %v280 = vrot.slane %v279, 2
    %v281 = vsel %vm270, %v279, %v280
    %v283 = vadd.f32 %v262, %v281
    %s284 = sld [smem:[#allocation2 + $0x9]]
    %v285 = vstv %s284
    %v286 = vmul.f32 %v285, %v101
    %v287 = vadd.f32 %v273, %v286
    %s288 = sld [smem:[#allocation2 + $0x24]]
    %v289 = vstv %s288
    %v290 = vmul.f32 %v289, %v101
    %v291 = vadd.f32 %v283, %v290
    %s292 = sld [smem:[#allocation2 + $0xa]]
    %v293 = vstv %s292
    %v294 = vmul.f32 %v293, %v101
    %296 = vrot.lane.b32.xlu0 %v294, 127
    %v297 = vpop.permute.xlu0 %296
    %v298 = vrot.slane %v297, 2
    %v299 = vsel %vm123, %v297, %v298
    %v301 = vadd.f32 %v287, %v299
    %s302 = sld [smem:[#allocation2 + $0x25]]
    %v303 = vstv %s302
    %v304 = vmul.f32 %v303, %v101
    %306 = vrot.lane.b32.xlu0 %v304, 127
    %v307 = vpop.permute.xlu0 %306
    %v308 = vrot.slane %v307, 2
    %v309 = vsel %vm123, %v307, %v308
    %v311 = vadd.f32 %v291, %v309
    %s312 = sld [smem:[#allocation2 + $0xb]]
    %v313 = vstv %s312
    %v314 = vmul.f32 %v313, %v101
    %316 = vrot.lane.b32.xlu0 %v314, 126
    %v317 = vpop.permute.xlu0 %316
    %v318 = vrot.slane %v317, 2
    %v319 = vsel %vm144, %v317, %v318
    %v321 = vadd.f32 %v301, %v319
    %s322 = sld [smem:[#allocation2 + $0x26]]
    %v323 = vstv %s322
    %v324 = vmul.f32 %v323, %v101
    %326 = vrot.lane.b32.xlu0 %v324, 126
    %v327 = vpop.permute.xlu0 %326
    %v328 = vrot.slane %v327, 2
    %v329 = vsel %vm144, %v327, %v328
    %v331 = vadd.f32 %v311, %v329
    %s332 = sld [smem:[#allocation2 + $0xc]]
    %v333 = vstv %s332
    %v334 = vmul.f32 %v333, %v101
    %336 = vrot.lane.b32.xlu0 %v334, 112
    %v337 = vpop.permute.xlu0 %336
    %v338 = vrot.slane %v337, 2
    %v339 = vsel %vm165, %v337, %v338
    %v341 = vadd.f32 %v321, %v339
    %s342 = sld [smem:[#allocation2 + $0x27]]
    %v343 = vstv %s342
    %v344 = vmul.f32 %v343, %v101
    %346 = vrot.lane.b32.xlu0 %v344, 112
    %v347 = vpop.permute.xlu0 %346
    %v348 = vrot.slane %v347, 2
    %v349 = vsel %vm165, %v347, %v348
    %v351 = vadd.f32 %v331, %v349
    %s352 = sld [smem:[#allocation2 + $0xd]]
    %v353 = vstv %s352
    %v354 = vmul.f32 %v353, %v101
    %356 = vrot.lane.b32.xlu0 %v354, 111
    %v357 = vpop.permute.xlu0 %356
    %v358 = vrot.slane %v357, 2
    %v359 = vsel %vm186, %v357, %v358
    %v361 = vadd.f32 %v341, %v359
    %s362 = sld [smem:[#allocation2 + $0x28]]
    %v363 = vstv %s362
    %v364 = vmul.f32 %v363, %v101
    %366 = vrot.lane.b32.xlu0 %v364, 111
    %v367 = vpop.permute.xlu0 %366
    %v368 = vrot.slane %v367, 2
    %v369 = vsel %vm186, %v367, %v368
    %v371 = vadd.f32 %v351, %v369
    %s372 = sld [smem:[#allocation2 + $0xe]]
    %v373 = vstv %s372
    %v374 = vmul.f32 %v373, %v101
    %376 = vrot.lane.b32.xlu0 %v374, 110
    %v377 = vpop.permute.xlu0 %376
    %v378 = vrot.slane %v377, 2
    %v379 = vsel %vm207, %v377, %v378
    %v381 = vadd.f32 %v361, %v379
    %s382 = sld [smem:[#allocation2 + $0x29]]
    %v383 = vstv %s382
    %v384 = vmul.f32 %v383, %v101
    %386 = vrot.lane.b32.xlu0 %v384, 110
    %v387 = vpop.permute.xlu0 %386
    %v388 = vrot.slane %v387, 2
    %v389 = vsel %vm207, %v387, %v388
    %v391 = vadd.f32 %v371, %v389
    %s392 = sld [smem:[#allocation2 + $0xf]]
    %v393 = vstv %s392
    %v394 = vmul.f32 %v393, %v101
    %396 = vrot.lane.b32.xlu0 %v394, 96
    %v397 = vpop.permute.xlu0 %396
    %v398 = vrot.slane %v397, 2
    %v399 = vsel %vm228, %v397, %v398
    %v401 = vadd.f32 %v381, %v399
    %s402 = sld [smem:[#allocation2 + $0x2a]]
    %v403 = vstv %s402
    %v404 = vmul.f32 %v403, %v101
    %406 = vrot.lane.b32.xlu0 %v404, 96
    %v407 = vpop.permute.xlu0 %406
    %v408 = vrot.slane %v407, 2
    %v409 = vsel %vm228, %v407, %v408
    %v411 = vadd.f32 %v391, %v409
    %s412 = sld [smem:[#allocation2 + $0x10]]
    %v413 = vstv %s412
    %v414 = vmul.f32 %v413, %v101
    %416 = vrot.lane.b32.xlu0 %v414, 95
    %v417 = vpop.permute.xlu0 %416
    %v418 = vrot.slane %v417, 2
    %v419 = vsel %vm249, %v417, %v418
    %v421 = vadd.f32 %v401, %v419
    %s422 = sld [smem:[#allocation2 + $0x2b]]
    %v423 = vstv %s422
    %v424 = vmul.f32 %v423, %v101
    %426 = vrot.lane.b32.xlu0 %v424, 95
    %v427 = vpop.permute.xlu0 %426
    %v428 = vrot.slane %v427, 2
    %v429 = vsel %vm249, %v427, %v428
    %v431 = vadd.f32 %v411, %v429
    %s432 = sld [smem:[#allocation2 + $0x11]]
    %v433 = vstv %s432
    %v434 = vmul.f32 %v433, %v101
    %436 = vrot.lane.b32.xlu0 %v434, 94
    %v437 = vpop.permute.xlu0 %436
    %v438 = vrot.slane %v437, 2
    %v439 = vsel %vm270, %v437, %v438
    %v441 = vadd.f32 %v421, %v439
    %s442 = sld [smem:[#allocation2 + $0x2c]]
    %v443 = vstv %s442
    %v444 = vmul.f32 %v443, %v101
    %446 = vrot.lane.b32.xlu0 %v444, 94
    %v447 = vpop.permute.xlu0 %446
    %v448 = vrot.slane %v447, 2
    %v449 = vsel %vm270, %v447, %v448
    %v451 = vadd.f32 %v431, %v449
    %s452 = sld [smem:[#allocation2 + $0x12]]
    %v453 = vstv %s452
    %v454 = vmul.f32 %v453, %v103
    %v455 = vadd.f32 %v441, %v454
    %s456 = sld [smem:[#allocation2 + $0x2d]]
    %v457 = vstv %s456
    %v458 = vmul.f32 %v457, %v103
    %v459 = vadd.f32 %v451, %v458
    %s460 = sld [smem:[#allocation2 + $0x13]]
    %v461 = vstv %s460
    %v462 = vmul.f32 %v461, %v103
    %464 = vrot.lane.b32.xlu0 %v462, 127
    %v465 = vpop.permute.xlu0 %464
    %v466 = vrot.slane %v465, 2
    %v467 = vsel %vm123, %v465, %v466
    %v469 = vadd.f32 %v455, %v467
    %s470 = sld [smem:[#allocation2 + $0x2e]]
    %v471 = vstv %s470
    %v472 = vmul.f32 %v471, %v103
    %474 = vrot.lane.b32.xlu0 %v472, 127
    %v475 = vpop.permute.xlu0 %474
    %v476 = vrot.slane %v475, 2
    %v477 = vsel %vm123, %v475, %v476
    %v479 = vadd.f32 %v459, %v477
    %s480 = sld [smem:[#allocation2 + $0x14]]
    %v481 = vstv %s480
    %v482 = vmul.f32 %v481, %v103
    %484 = vrot.lane.b32.xlu0 %v482, 126
    %v485 = vpop.permute.xlu0 %484
    %v486 = vrot.slane %v485, 2
    %v487 = vsel %vm144, %v485, %v486
    %v489 = vadd.f32 %v469, %v487
    %s490 = sld [smem:[#allocation2 + $0x2f]]
    %v491 = vstv %s490
    %v492 = vmul.f32 %v491, %v103
    %494 = vrot.lane.b32.xlu0 %v492, 126
    %v495 = vpop.permute.xlu0 %494
    %v496 = vrot.slane %v495, 2
    %v497 = vsel %vm144, %v495, %v496
    %v499 = vadd.f32 %v479, %v497
    %s500 = sld [smem:[#allocation2 + $0x15]]
    %v501 = vstv %s500
    %v502 = vmul.f32 %v501, %v103
    %504 = vrot.lane.b32.xlu0 %v502, 112
    %v505 = vpop.permute.xlu0 %504
    %v506 = vrot.slane %v505, 2
    %v507 = vsel %vm165, %v505, %v506
    %v509 = vadd.f32 %v489, %v507
    %s510 = sld [smem:[#allocation2 + $0x30]]
    %v511 = vstv %s510
    %v512 = vmul.f32 %v511, %v103
    %514 = vrot.lane.b32.xlu0 %v512, 112
    %v515 = vpop.permute.xlu0 %514
    %v516 = vrot.slane %v515, 2
    %v517 = vsel %vm165, %v515, %v516
    %v519 = vadd.f32 %v499, %v517
    %s520 = sld [smem:[#allocation2 + $0x16]]
    %v521 = vstv %s520
    %v522 = vmul.f32 %v521, %v103
    %524 = vrot.lane.b32.xlu0 %v522, 111
    %v525 = vpop.permute.xlu0 %524
    %v526 = vrot.slane %v525, 2
    %v527 = vsel %vm186, %v525, %v526
    %v529 = vadd.f32 %v509, %v527
    %s530 = sld [smem:[#allocation2 + $0x31]]
    %v531 = vstv %s530
    %v532 = vmul.f32 %v531, %v103
    %534 = vrot.lane.b32.xlu0 %v532, 111
    %v535 = vpop.permute.xlu0 %534
    %v536 = vrot.slane %v535, 2
    %v537 = vsel %vm186, %v535, %v536
    %v539 = vadd.f32 %v519, %v537
    %s540 = sld [smem:[#allocation2 + $0x17]]
    %v541 = vstv %s540
    %v542 = vmul.f32 %v541, %v103
    %544 = vrot.lane.b32.xlu0 %v542, 110
    %v545 = vpop.permute.xlu0 %544
    %v546 = vrot.slane %v545, 2
    %v547 = vsel %vm207, %v545, %v546
    %v549 = vadd.f32 %v529, %v547
    %s550 = sld [smem:[#allocation2 + $0x32]]
    %v551 = vstv %s550
    %v552 = vmul.f32 %v551, %v103
    %554 = vrot.lane.b32.xlu0 %v552, 110
    %v555 = vpop.permute.xlu0 %554
    %v556 = vrot.slane %v555, 2
    %v557 = vsel %vm207, %v555, %v556
    %v559 = vadd.f32 %v539, %v557
    %s560 = sld [smem:[#allocation2 + $0x18]]
    %v561 = vstv %s560
    %v562 = vmul.f32 %v561, %v103
    %564 = vrot.lane.b32.xlu0 %v562, 96
    %v565 = vpop.permute.xlu0 %564
    %v566 = vrot.slane %v565, 2
    %v567 = vsel %vm228, %v565, %v566
    %v569 = vadd.f32 %v549, %v567
    %s570 = sld [smem:[#allocation2 + $0x33]]
    %v571 = vstv %s570
    %v572 = vmul.f32 %v571, %v103
    %574 = vrot.lane.b32.xlu0 %v572, 96
    %v575 = vpop.permute.xlu0 %574
    %v576 = vrot.slane %v575, 2
    %v577 = vsel %vm228, %v575, %v576
    %v579 = vadd.f32 %v559, %v577
    %s580 = sld [smem:[#allocation2 + $0x19]]
    %v581 = vstv %s580
    %v582 = vmul.f32 %v581, %v103
    %584 = vrot.lane.b32.xlu0 %v582, 95
    %v585 = vpop.permute.xlu0 %584
    %v586 = vrot.slane %v585, 2
    %v587 = vsel %vm249, %v585, %v586
    %v589 = vadd.f32 %v569, %v587
    %s590 = sld [smem:[#allocation2 + $0x34]]
    %v591 = vstv %s590
    %v592 = vmul.f32 %v591, %v103
    %594 = vrot.lane.b32.xlu0 %v592, 95
    %v595 = vpop.permute.xlu0 %594
    %v596 = vrot.slane %v595, 2
    %v597 = vsel %vm249, %v595, %v596
    %v599 = vadd.f32 %v579, %v597
    %s600 = sld [smem:[#allocation2 + $0x1a]]
    %v601 = vstv %s600
    %v602 = vmul.f32 %v601, %v103
    %604 = vrot.lane.b32.xlu0 %v602, 94
    %v605 = vpop.permute.xlu0 %604
    %v606 = vrot.slane %v605, 2
    %v607 = vsel %vm270, %v605, %v606
    %v609 = vadd.f32 %v589, %v607
    %s610 = sld [smem:[#allocation2 + $0x35]]
    %v611 = vstv %s610
    %v612 = vmul.f32 %v611, %v103
    %614 = vrot.lane.b32.xlu0 %v612, 94
    %v615 = vpop.permute.xlu0 %614
    %v616 = vrot.slane %v615, 2
    %v617 = vsel %vm270, %v615, %v616
    %v619 = vadd.f32 %v599, %v617
    %s620 = sld [smem:[#allocation7]]
    %v621 = vstv %s620
    %s622 = sld [smem:[#allocation7 + $0x1]]
    %v623 = vstv %s622
    %s624 = sld [smem:[#allocation6]]
    %v625 = vstv %s624
    %v626 = vmul.f32 %v625, %v609
    %v627 = vadd.f32 %v621, %v626
    %s628 = sld [smem:[#allocation6 + $0x12]]
    %v629 = vstv %s628
    %v630 = vmul.f32 %v629, %v609
    %v631 = vadd.f32 %v623, %v630
    %s632 = sld [smem:[#allocation6 + $0x1]]
    %v633 = vstv %s632
    %v634 = vmul.f32 %v633, %v609
    %636 = vrot.lane.b32.xlu0 %v634, 127
    %v637 = vpop.permute.xlu0 %636
    %v638 = vrot.slane %v637, 2
    %v639 = vsel %vm123, %v637, %v638
    %v641 = vadd.f32 %v627, %v639
    %s642 = sld [smem:[#allocation6 + $0x13]]
    %v643 = vstv %s642
    %v644 = vmul.f32 %v643, %v609
    %646 = vrot.lane.b32.xlu0 %v644, 127
    %v647 = vpop.permute.xlu0 %646
    %v648 = vrot.slane %v647, 2
    %v649 = vsel %vm123, %v647, %v648
    %v651 = vadd.f32 %v631, %v649
    %s652 = sld [smem:[#allocation6 + $0x2]]
    %v653 = vstv %s652
    %v654 = vmul.f32 %v653, %v609
    %656 = vrot.lane.b32.xlu0 %v654, 126
    %v657 = vpop.permute.xlu0 %656
    %v658 = vrot.slane %v657, 2
    %v659 = vsel %vm144, %v657, %v658
    %v661 = vadd.f32 %v641, %v659
    %s662 = sld [smem:[#allocation6 + $0x14]]
    %v663 = vstv %s662
    %v664 = vmul.f32 %v663, %v609
    %666 = vrot.lane.b32.xlu0 %v664, 126
    %v667 = vpop.permute.xlu0 %666
    %v668 = vrot.slane %v667, 2
    %v669 = vsel %vm144, %v667, %v668
    %v671 = vadd.f32 %v651, %v669
    %s672 = sld [smem:[#allocation6 + $0x3]]
    %v673 = vstv %s672
    %v674 = vmul.f32 %v673, %v609
    %676 = vrot.lane.b32.xlu0 %v674, 112
    %v677 = vpop.permute.xlu0 %676
    %v678 = vrot.slane %v677, 2
    %v679 = vsel %vm165, %v677, %v678
    %v681 = vadd.f32 %v661, %v679
    %s682 = sld [smem:[#allocation6 + $0x15]]
    %v683 = vstv %s682
    %v684 = vmul.f32 %v683, %v609
    %686 = vrot.lane.b32.xlu0 %v684, 112
    %v687 = vpop.permute.xlu0 %686
    %v688 = vrot.slane %v687, 2
    %v689 = vsel %vm165, %v687, %v688
    %v691 = vadd.f32 %v671, %v689
    %s692 = sld [smem:[#allocation6 + $0x4]]
    %v693 = vstv %s692
    %v694 = vmul.f32 %v693, %v609
    %696 = vrot.lane.b32.xlu0 %v694, 111
    %v697 = vpop.permute.xlu0 %696
    %v698 = vrot.slane %v697, 2
    %v699 = vsel %vm186, %v697, %v698
    %v701 = vadd.f32 %v681, %v699
    %s702 = sld [smem:[#allocation6 + $0x16]]
    %v703 = vstv %s702
    %v704 = vmul.f32 %v703, %v609
    %706 = vrot.lane.b32.xlu0 %v704, 111
    %v707 = vpop.permute.xlu0 %706
    %v708 = vrot.slane %v707, 2
    %v709 = vsel %vm186, %v707, %v708
    %v711 = vadd.f32 %v691, %v709
    %s712 = sld [smem:[#allocation6 + $0x5]]
    %v713 = vstv %s712
    %v714 = vmul.f32 %v713, %v609
    %716 = vrot.lane.b32.xlu0 %v714, 110
    %v717 = vpop.permute.xlu0 %716
    %v718 = vrot.slane %v717, 2
    %v719 = vsel %vm207, %v717, %v718
    %v721 = vadd.f32 %v701, %v719
    %s722 = sld [smem:[#allocation6 + $0x17]]
    %v723 = vstv %s722
    %v724 = vmul.f32 %v723, %v609
    %726 = vrot.lane.b32.xlu0 %v724, 110
    %v727 = vpop.permute.xlu0 %726
    %v728 = vrot.slane %v727, 2
    %v729 = vsel %vm207, %v727, %v728
    %v731 = vadd.f32 %v711, %v729
    %s732 = sld [smem:[#allocation6 + $0x6]]
    %v733 = vstv %s732
    %v734 = vmul.f32 %v733, %v609
    %736 = vrot.lane.b32.xlu0 %v734, 96
    %v737 = vpop.permute.xlu0 %736
    %v738 = vrot.slane %v737, 2
    %v739 = vsel %vm228, %v737, %v738
    %v741 = vadd.f32 %v721, %v739
    %s742 = sld [smem:[#allocation6 + $0x18]]
    %v743 = vstv %s742
    %v744 = vmul.f32 %v743, %v609
    %746 = vrot.lane.b32.xlu0 %v744, 96
    %v747 = vpop.permute.xlu0 %746
    %v748 = vrot.slane %v747, 2
    %v749 = vsel %vm228, %v747, %v748
    %v751 = vadd.f32 %v731, %v749
    %s752 = sld [smem:[#allocation6 + $0x7]]
    %v753 = vstv %s752
    %v754 = vmul.f32 %v753, %v609
    %756 = vrot.lane.b32.xlu0 %v754, 95
    %v757 = vpop.permute.xlu0 %756
    %v758 = vrot.slane %v757, 2
    %v759 = vsel %vm249, %v757, %v758
    %v761 = vadd.f32 %v741, %v759
    %s762 = sld [smem:[#allocation6 + $0x19]]
    %v763 = vstv %s762
    %v764 = vmul.f32 %v763, %v609
    %766 = vrot.lane.b32.xlu0 %v764, 95
    %v767 = vpop.permute.xlu0 %766
    %v768 = vrot.slane %v767, 2
    %v769 = vsel %vm249, %v767, %v768
    %v771 = vadd.f32 %v751, %v769
    %s772 = sld [smem:[#allocation6 + $0x8]]
    %v773 = vstv %s772
    %v774 = vmul.f32 %v773, %v609
    %776 = vrot.lane.b32.xlu0 %v774, 94
    %v777 = vpop.permute.xlu0 %776
    %v778 = vrot.slane %v777, 2
    %v779 = vsel %vm270, %v777, %v778
    %v781 = vadd.f32 %v761, %v779
    %s782 = sld [smem:[#allocation6 + $0x1a]]
    %v783 = vstv %s782
    %v784 = vmul.f32 %v783, %v609
    %786 = vrot.lane.b32.xlu0 %v784, 94
    %v787 = vpop.permute.xlu0 %786
    %v788 = vrot.slane %v787, 2
    %v789 = vsel %vm270, %v787, %v788
    %v791 = vadd.f32 %v771, %v789
    %s792 = sld [smem:[#allocation6 + $0x9]]
    %v793 = vstv %s792
    %v794 = vmul.f32 %v793, %v619
    %v795 = vadd.f32 %v781, %v794
    %s796 = sld [smem:[#allocation6 + $0x1b]]
    %v797 = vstv %s796
    %v798 = vmul.f32 %v797, %v619
    %v799 = vadd.f32 %v791, %v798
    %s800 = sld [smem:[#allocation6 + $0xa]]
    %v801 = vstv %s800
    %v802 = vmul.f32 %v801, %v619
    %804 = vrot.lane.b32.xlu0 %v802, 127
    %v805 = vpop.permute.xlu0 %804
    %v806 = vrot.slane %v805, 2
    %v807 = vsel %vm123, %v805, %v806
    %v809 = vadd.f32 %v795, %v807
    %s810 = sld [smem:[#allocation6 + $0x1c]]
    %v811 = vstv %s810
    %v812 = vmul.f32 %v811, %v619
    %814 = vrot.lane.b32.xlu0 %v812, 127
    %v815 = vpop.permute.xlu0 %814
    %v816 = vrot.slane %v815, 2
    %v817 = vsel %vm123, %v815, %v816
    %v819 = vadd.f32 %v799, %v817
    %s820 = sld [smem:[#allocation6 + $0xb]]
    %v821 = vstv %s820
    %v822 = vmul.f32 %v821, %v619
    %824 = vrot.lane.b32.xlu0 %v822, 126
    %v825 = vpop.permute.xlu0 %824
    %v826 = vrot.slane %v825, 2
    %v827 = vsel %vm144, %v825, %v826
    %v829 = vadd.f32 %v809, %v827
    %s830 = sld [smem:[#allocation6 + $0x1d]]
    %v831 = vstv %s830
    %v832 = vmul.f32 %v831, %v619
    %834 = vrot.lane.b32.xlu0 %v832, 126
    %v835 = vpop.permute.xlu0 %834
    %v836 = vrot.slane %v835, 2
    %v837 = vsel %vm144, %v835, %v836
    %v839 = vadd.f32 %v819, %v837
    %s840 = sld [smem:[#allocation6 + $0xc]]
    %v841 = vstv %s840
    %v842 = vmul.f32 %v841, %v619
    %844 = vrot.lane.b32.xlu0 %v842, 112
    %v845 = vpop.permute.xlu0 %844
    %v846 = vrot.slane %v845, 2
    %v847 = vsel %vm165, %v845, %v846
    %v849 = vadd.f32 %v829, %v847
    %s850 = sld [smem:[#allocation6 + $0x1e]]
    %v851 = vstv %s850
    %v852 = vmul.f32 %v851, %v619
    %854 = vrot.lane.b32.xlu0 %v852, 112
    %v855 = vpop.permute.xlu0 %854
    %v856 = vrot.slane %v855, 2
    %v857 = vsel %vm165, %v855, %v856
    %v859 = vadd.f32 %v839, %v857
    %s860 = sld [smem:[#allocation6 + $0xd]]
    %v861 = vstv %s860
    %v862 = vmul.f32 %v861, %v619
    %864 = vrot.lane.b32.xlu0 %v862, 111
    %v865 = vpop.permute.xlu0 %864
    %v866 = vrot.slane %v865, 2
    %v867 = vsel %vm186, %v865, %v866
    %v869 = vadd.f32 %v849, %v867
    %s870 = sld [smem:[#allocation6 + $0x1f]]
    %v871 = vstv %s870
    %v872 = vmul.f32 %v871, %v619
    %874 = vrot.lane.b32.xlu0 %v872, 111
    %v875 = vpop.permute.xlu0 %874
    %v876 = vrot.slane %v875, 2
    %v877 = vsel %vm186, %v875, %v876
    %v879 = vadd.f32 %v859, %v877
    %s880 = sld [smem:[#allocation6 + $0xe]]
    %v881 = vstv %s880
    %v882 = vmul.f32 %v881, %v619
    %884 = vrot.lane.b32.xlu0 %v882, 110
    %v885 = vpop.permute.xlu0 %884
    %v886 = vrot.slane %v885, 2
    %v887 = vsel %vm207, %v885, %v886
    %v889 = vadd.f32 %v869, %v887
    %s890 = sld [smem:[#allocation6 + $0x20]]
    %v891 = vstv %s890
    %v892 = vmul.f32 %v891, %v619
    %894 = vrot.lane.b32.xlu0 %v892, 110
    %v895 = vpop.permute.xlu0 %894
    %v896 = vrot.slane %v895, 2
    %v897 = vsel %vm207, %v895, %v896
    %v899 = vadd.f32 %v879, %v897
    %s900 = sld [smem:[#allocation6 + $0xf]]
    %v901 = vstv %s900
    %v902 = vmul.f32 %v901, %v619
    %904 = vrot.lane.b32.xlu0 %v902, 96
    %v905 = vpop.permute.xlu0 %904
    %v906 = vrot.slane %v905, 2
    %v907 = vsel %vm228, %v905, %v906
    %v909 = vadd.f32 %v889, %v907
    %s910 = sld [smem:[#allocation6 + $0x21]]
    %v911 = vstv %s910
    %v912 = vmul.f32 %v911, %v619
    %914 = vrot.lane.b32.xlu0 %v912, 96
    %v915 = vpop.permute.xlu0 %914
    %v916 = vrot.slane %v915, 2
    %v917 = vsel %vm228, %v915, %v916
    %v919 = vadd.f32 %v899, %v917
    %s920 = sld [smem:[#allocation6 + $0x10]]
    %v921 = vstv %s920
    %v922 = vmul.f32 %v921, %v619
    %924 = vrot.lane.b32.xlu0 %v922, 95
    %v925 = vpop.permute.xlu0 %924
    %v926 = vrot.slane %v925, 2
    %v927 = vsel %vm249, %v925, %v926
    %v929 = vadd.f32 %v909, %v927
    %s930 = sld [smem:[#allocation6 + $0x22]]
    %v931 = vstv %s930
    %v932 = vmul.f32 %v931, %v619
    %934 = vrot.lane.b32.xlu0 %v932, 95
    %v935 = vpop.permute.xlu0 %934
    %v936 = vrot.slane %v935, 2
    %v937 = vsel %vm249, %v935, %v936
    %v939 = vadd.f32 %v919, %v937
    %s940 = sld [smem:[#allocation6 + $0x11]]
    %v941 = vstv %s940
    %v942 = vmul.f32 %v941, %v619
    %944 = vrot.lane.b32.xlu0 %v942, 94
    %v945 = vpop.permute.xlu0 %944
    %v946 = vrot.slane %v945, 2
    %v947 = vsel %vm270, %v945, %v946
    %v949 = vadd.f32 %v929, %v947
    %s950 = sld [smem:[#allocation6 + $0x23]]
    %v951 = vstv %s950
    %v952 = vmul.f32 %v951, %v619
    %954 = vrot.lane.b32.xlu0 %v952, 94
    %v955 = vpop.permute.xlu0 %954
    %v956 = vrot.slane %v955, 2
    %v957 = vsel %vm270, %v955, %v956
    %v959 = vadd.f32 %v939, %v957
    %vm960 = vcmask 1041408
    %vm961 = vcmask 486402
    %vm962 = vmor %vm961, %vm960
    %963 = vst.msk [vmem:[%s7] sm:$0xf] %vm962, %v949
    %s964 = scalar_lea.vmem %s7, 4
    %965 = vst.msk [vmem:[%s964] sm:$0xf] %vm962, %v959
    %s966 = sld [smem:[#allocation10]]
    %v967 = vstv %s966
    %s968 = sld [smem:[#allocation10 + $0x1]]
    %v969 = vstv %s968
    %s970 = sld [smem:[#allocation9]]
    %v971 = vstv %s970
    %v972 = vmul.f32 %v971, %v949
    %v973 = vadd.f32 %v967, %v972
    %s974 = sld [smem:[#allocation9 + $0x12]]
    %v975 = vstv %s974
    %v976 = vmul.f32 %v975, %v949
    %v977 = vadd.f32 %v969, %v976
    %s978 = sld [smem:[#allocation9 + $0x1]]
    %v979 = vstv %s978
    %v980 = vmul.f32 %v979, %v949
    %982 = vrot.lane.b32.xlu0 %v980, 127
    %v983 = vpop.permute.xlu0 %982
    %v984 = vrot.slane %v983, 2
    %v985 = vsel %vm123, %v983, %v984
    %v987 = vadd.f32 %v973, %v985
    %s988 = sld [smem:[#allocation9 + $0x13]]
    %v989 = vstv %s988
    %v990 = vmul.f32 %v989, %v949
    %992 = vrot.lane.b32.xlu0 %v990, 127
    %v993 = vpop.permute.xlu0 %992
    %v994 = vrot.slane %v993, 2
    %v995 = vsel %vm123, %v993, %v994
    %v997 = vadd.f32 %v977, %v995
    %s998 = sld [smem:[#allocation9 + $0x2]]
    %v999 = vstv %s998
    %v1000 = vmul.f32 %v999, %v949
    %1002 = vrot.lane.b32.xlu0 %v1000, 126
    %v1003 = vpop.permute.xlu0 %1002
    %v1004 = vrot.slane %v1003, 2
    %v1005 = vsel %vm144, %v1003, %v1004
    %v1007 = vadd.f32 %v987, %v1005
    %s1008 = sld [smem:[#allocation9 + $0x14]]
    %v1009 = vstv %s1008
    %v1010 = vmul.f32 %v1009, %v949
    %1012 = vrot.lane.b32.xlu0 %v1010, 126
    %v1013 = vpop.permute.xlu0 %1012
    %v1014 = vrot.slane %v1013, 2
    %v1015 = vsel %vm144, %v1013, %v1014
    %v1017 = vadd.f32 %v997, %v1015
    %s1018 = sld [smem:[#allocation9 + $0x3]]
    %v1019 = vstv %s1018
    %v1020 = vmul.f32 %v1019, %v949
    %1022 = vrot.lane.b32.xlu0 %v1020, 112
    %v1023 = vpop.permute.xlu0 %1022
    %v1024 = vrot.slane %v1023, 2
    %v1025 = vsel %vm165, %v1023, %v1024
    %v1027 = vadd.f32 %v1007, %v1025
    %s1028 = sld [smem:[#allocation9 + $0x15]]
    %v1029 = vstv %s1028
    %v1030 = vmul.f32 %v1029, %v949
    %1032 = vrot.lane.b32.xlu0 %v1030, 112
    %v1033 = vpop.permute.xlu0 %1032
    %v1034 = vrot.slane %v1033, 2
    %v1035 = vsel %vm165, %v1033, %v1034
    %v1037 = vadd.f32 %v1017, %v1035
    %s1038 = sld [smem:[#allocation9 + $0x4]]
    %v1039 = vstv %s1038
    %v1040 = vmul.f32 %v1039, %v949
    %1042 = vrot.lane.b32.xlu0 %v1040, 111
    %v1043 = vpop.permute.xlu0 %1042
    %v1044 = vrot.slane %v1043, 2
    %v1045 = vsel %vm186, %v1043, %v1044
    %v1047 = vadd.f32 %v1027, %v1045
    %s1048 = sld [smem:[#allocation9 + $0x16]]
    %v1049 = vstv %s1048
    %v1050 = vmul.f32 %v1049, %v949
    %1052 = vrot.lane.b32.xlu0 %v1050, 111
    %v1053 = vpop.permute.xlu0 %1052
    %v1054 = vrot.slane %v1053, 2
    %v1055 = vsel %vm186, %v1053, %v1054
    %v1057 = vadd.f32 %v1037, %v1055
    %s1058 = sld [smem:[#allocation9 + $0x5]]
    %v1059 = vstv %s1058
    %v1060 = vmul.f32 %v1059, %v949
    %1062 = vrot.lane.b32.xlu0 %v1060, 110
    %v1063 = vpop.permute.xlu0 %1062
    %v1064 = vrot.slane %v1063, 2
    %v1065 = vsel %vm207, %v1063, %v1064
    %v1067 = vadd.f32 %v1047, %v1065
    %s1068 = sld [smem:[#allocation9 + $0x17]]
    %v1069 = vstv %s1068
    %v1070 = vmul.f32 %v1069, %v949
    %1072 = vrot.lane.b32.xlu0 %v1070, 110
    %v1073 = vpop.permute.xlu0 %1072
    %v1074 = vrot.slane %v1073, 2
    %v1075 = vsel %vm207, %v1073, %v1074
    %v1077 = vadd.f32 %v1057, %v1075
    %s1078 = sld [smem:[#allocation9 + $0x6]]
    %v1079 = vstv %s1078
    %v1080 = vmul.f32 %v1079, %v949
    %1082 = vrot.lane.b32.xlu0 %v1080, 96
    %v1083 = vpop.permute.xlu0 %1082
    %v1084 = vrot.slane %v1083, 2
    %v1085 = vsel %vm228, %v1083, %v1084
    %v1087 = vadd.f32 %v1067, %v1085
    %s1088 = sld [smem:[#allocation9 + $0x18]]
    %v1089 = vstv %s1088
    %v1090 = vmul.f32 %v1089, %v949
    %1092 = vrot.lane.b32.xlu0 %v1090, 96
    %v1093 = vpop.permute.xlu0 %1092
    %v1094 = vrot.slane %v1093, 2
    %v1095 = vsel %vm228, %v1093, %v1094
    %v1097 = vadd.f32 %v1077, %v1095
    %s1098 = sld [smem:[#allocation9 + $0x7]]
    %v1099 = vstv %s1098
    %v1100 = vmul.f32 %v1099, %v949
    %1102 = vrot.lane.b32.xlu0 %v1100, 95
    %v1103 = vpop.permute.xlu0 %1102
    %v1104 = vrot.slane %v1103, 2
    %v1105 = vsel %vm249, %v1103, %v1104
    %v1107 = vadd.f32 %v1087, %v1105
    %s1108 = sld [smem:[#allocation9 + $0x19]]
    %v1109 = vstv %s1108
    %v1110 = vmul.f32 %v1109, %v949
    %1112 = vrot.lane.b32.xlu0 %v1110, 95
    %v1113 = vpop.permute.xlu0 %1112
    %v1114 = vrot.slane %v1113, 2
    %v1115 = vsel %vm249, %v1113, %v1114
    %v1117 = vadd.f32 %v1097, %v1115
    %s1118 = sld [smem:[#allocation9 + $0x8]]
    %v1119 = vstv %s1118
    %v1120 = vmul.f32 %v1119, %v949
    %1122 = vrot.lane.b32.xlu0 %v1120, 94
    %v1123 = vpop.permute.xlu0 %1122
    %v1124 = vrot.slane %v1123, 2
    %v1125 = vsel %vm270, %v1123, %v1124
    %v1127 = vadd.f32 %v1107, %v1125
    %s1128 = sld [smem:[#allocation9 + $0x1a]]
    %v1129 = vstv %s1128
    %v1130 = vmul.f32 %v1129, %v949
    %1132 = vrot.lane.b32.xlu0 %v1130, 94
    %v1133 = vpop.permute.xlu0 %1132
    %v1134 = vrot.slane %v1133, 2
    %v1135 = vsel %vm270, %v1133, %v1134
    %v1137 = vadd.f32 %v1117, %v1135
    %s1138 = sld [smem:[#allocation9 + $0x9]]
    %v1139 = vstv %s1138
    %v1140 = vmul.f32 %v1139, %v959
    %v1141 = vadd.f32 %v1127, %v1140
    %s1142 = sld [smem:[#allocation9 + $0x1b]]
    %v1143 = vstv %s1142
    %v1144 = vmul.f32 %v1143, %v959
    %v1145 = vadd.f32 %v1137, %v1144
    %s1146 = sld [smem:[#allocation9 + $0xa]]
    %v1147 = vstv %s1146
    %v1148 = vmul.f32 %v1147, %v959
    %1150 = vrot.lane.b32.xlu0 %v1148, 127
    %v1151 = vpop.permute.xlu0 %1150
    %v1152 = vrot.slane %v1151, 2
    %v1153 = vsel %vm123, %v1151, %v1152
    %v1155 = vadd.f32 %v1141, %v1153
    %s1156 = sld [smem:[#allocation9 + $0x1c]]
    %v1157 = vstv %s1156
    %v1158 = vmul.f32 %v1157, %v959
    %1160 = vrot.lane.b32.xlu0 %v1158, 127
    %v1161 = vpop.permute.xlu0 %1160
    %v1162 = vrot.slane %v1161, 2
    %v1163 = vsel %vm123, %v1161, %v1162
    %v1165 = vadd.f32 %v1145, %v1163
    %s1166 = sld [smem:[#allocation9 + $0xb]]
    %v1167 = vstv %s1166
    %v1168 = vmul.f32 %v1167, %v959
    %1170 = vrot.lane.b32.xlu0 %v1168, 126
    %v1171 = vpop.permute.xlu0 %1170
    %v1172 = vrot.slane %v1171, 2
    %v1173 = vsel %vm144, %v1171, %v1172
    %v1175 = vadd.f32 %v1155, %v1173
    %s1176 = sld [smem:[#allocation9 + $0x1d]]
    %v1177 = vstv %s1176
    %v1178 = vmul.f32 %v1177, %v959
    %1180 = vrot.lane.b32.xlu0 %v1178, 126
    %v1181 = vpop.permute.xlu0 %1180
    %v1182 = vrot.slane %v1181, 2
    %v1183 = vsel %vm144, %v1181, %v1182
    %v1185 = vadd.f32 %v1165, %v1183
    %s1186 = sld [smem:[#allocation9 + $0xc]]
    %v1187 = vstv %s1186
    %v1188 = vmul.f32 %v1187, %v959
    %1190 = vrot.lane.b32.xlu0 %v1188, 112
    %v1191 = vpop.permute.xlu0 %1190
    %v1192 = vrot.slane %v1191, 2
    %v1193 = vsel %vm165, %v1191, %v1192
    %v1195 = vadd.f32 %v1175, %v1193
    %s1196 = sld [smem:[#allocation9 + $0x1e]]
    %v1197 = vstv %s1196
    %v1198 = vmul.f32 %v1197, %v959
    %1200 = vrot.lane.b32.xlu0 %v1198, 112
    %v1201 = vpop.permute.xlu0 %1200
    %v1202 = vrot.slane %v1201, 2
    %v1203 = vsel %vm165, %v1201, %v1202
    %v1205 = vadd.f32 %v1185, %v1203
    %s1206 = sld [smem:[#allocation9 + $0xd]]
    %v1207 = vstv %s1206
    %v1208 = vmul.f32 %v1207, %v959
    %1210 = vrot.lane.b32.xlu0 %v1208, 111
    %v1211 = vpop.permute.xlu0 %1210
    %v1212 = vrot.slane %v1211, 2
    %v1213 = vsel %vm186, %v1211, %v1212
    %v1215 = vadd.f32 %v1195, %v1213
    %s1216 = sld [smem:[#allocation9 + $0x1f]]
    %v1217 = vstv %s1216
    %v1218 = vmul.f32 %v1217, %v959
    %1220 = vrot.lane.b32.xlu0 %v1218, 111
    %v1221 = vpop.permute.xlu0 %1220
    %v1222 = vrot.slane %v1221, 2
    %v1223 = vsel %vm186, %v1221, %v1222
    %v1225 = vadd.f32 %v1205, %v1223
    %s1226 = sld [smem:[#allocation9 + $0xe]]
    %v1227 = vstv %s1226
    %v1228 = vmul.f32 %v1227, %v959
    %1230 = vrot.lane.b32.xlu0 %v1228, 110
    %v1231 = vpop.permute.xlu0 %1230
    %v1232 = vrot.slane %v1231, 2
    %v1233 = vsel %vm207, %v1231, %v1232
    %v1235 = vadd.f32 %v1215, %v1233
    %s1236 = sld [smem:[#allocation9 + $0x20]]
    %v1237 = vstv %s1236
    %v1238 = vmul.f32 %v1237, %v959
    %1240 = vrot.lane.b32.xlu0 %v1238, 110
    %v1241 = vpop.permute.xlu0 %1240
    %v1242 = vrot.slane %v1241, 2
    %v1243 = vsel %vm207, %v1241, %v1242
    %v1245 = vadd.f32 %v1225, %v1243
    %s1246 = sld [smem:[#allocation9 + $0xf]]
    %v1247 = vstv %s1246
    %v1248 = vmul.f32 %v1247, %v959
    %1250 = vrot.lane.b32.xlu0 %v1248, 96
    %v1251 = vpop.permute.xlu0 %1250
    %v1252 = vrot.slane %v1251, 2
    %v1253 = vsel %vm228, %v1251, %v1252
    %v1255 = vadd.f32 %v1235, %v1253
    %s1256 = sld [smem:[#allocation9 + $0x21]]
    %v1257 = vstv %s1256
    %v1258 = vmul.f32 %v1257, %v959
    %1260 = vrot.lane.b32.xlu0 %v1258, 96
    %v1261 = vpop.permute.xlu0 %1260
    %v1262 = vrot.slane %v1261, 2
    %v1263 = vsel %vm228, %v1261, %v1262
    %v1265 = vadd.f32 %v1245, %v1263
    %s1266 = sld [smem:[#allocation9 + $0x10]]
    %v1267 = vstv %s1266
    %v1268 = vmul.f32 %v1267, %v959
    %1270 = vrot.lane.b32.xlu0 %v1268, 95
    %v1271 = vpop.permute.xlu0 %1270
    %v1272 = vrot.slane %v1271, 2
    %v1273 = vsel %vm249, %v1271, %v1272
    %v1275 = vadd.f32 %v1255, %v1273
    %s1276 = sld [smem:[#allocation9 + $0x22]]
    %v1277 = vstv %s1276
    %v1278 = vmul.f32 %v1277, %v959
    %1280 = vrot.lane.b32.xlu0 %v1278, 95
    %v1281 = vpop.permute.xlu0 %1280
    %v1282 = vrot.slane %v1281, 2
    %v1283 = vsel %vm249, %v1281, %v1282
    %v1285 = vadd.f32 %v1265, %v1283
    %s1286 = sld [smem:[#allocation9 + $0x11]]
    %v1287 = vstv %s1286
    %v1288 = vmul.f32 %v1287, %v959
    %1290 = vrot.lane.b32.xlu0 %v1288, 94
    %v1291 = vpop.permute.xlu0 %1290
    %v1292 = vrot.slane %v1291, 2
    %v1293 = vsel %vm270, %v1291, %v1292
    %v1295 = vadd.f32 %v1275, %v1293
    %s1296 = sld [smem:[#allocation9 + $0x23]]
    %v1297 = vstv %s1296
    %v1298 = vmul.f32 %v1297, %v959
    %1300 = vrot.lane.b32.xlu0 %v1298, 94
    %v1301 = vpop.permute.xlu0 %1300
    %v1302 = vrot.slane %v1301, 2
    %v1303 = vsel %vm270, %v1301, %v1302
    %v1305 = vadd.f32 %v1285, %v1303
    %vm1306 = vcmask 207874
    %vm1307 = vmor %vm1306, %vm960
    %1308 = vst.msk [vmem:[%s8] sm:$0xf] %vm1307, %v1295
    %s1309 = scalar_lea.vmem %s8, 4
    %1310 = vst.msk [vmem:[%s1309] sm:$0xf] %vm1307, %v1305
    // Predicated region
    $region54: #{model_forward.1} parent=1 // pred_check
      _
    $region55: #{model_forward.1} parent=1 // pred_check_branch
      %1312 = sbr.rel (0) target = $region57
    $region56: #{model_forward.1} parent=1 // pred_region
      _
    $region57: #{model_forward.1} parent=1 // pred_fallthru
      _
    // Predicated region
    $region58: #{model_forward.1} parent=1 // pred_check
      _
    $region59: #{model_forward.1} parent=1 // pred_check_branch
      %1314 = sbr.rel (0) target = $region61
    $region60: #{model_forward.1} parent=1 // pred_region
      _
    $region61: #{model_forward.1} parent=1 // pred_fallthru
      _
    // Predicated region
    $region62: #{model_forward.1} parent=1 // pred_check
      _
    $region63: #{model_forward.1} parent=1 // pred_check_branch
      %1316 = sbr.rel (0) target = $region65
    $region64: #{model_forward.1} parent=1 // pred_region
      _
    $region65: #{model_forward.1} parent=1 // pred_fallthru
      _
    // Predicated region
    $region66: #{model_forward.1} parent=1 // pred_check
      _
    $region67: #{model_forward.1} parent=1 // pred_check_branch
      %1318 = sbr.rel (0) target = $region69
    $region68: #{model_forward.1} parent=1 // pred_region
      _
    $region69: #{model_forward.1} parent=1 // pred_fallthru
      _
    %1319 = vsyncpa [#allocation3], 1
    %1320 = vsyncpa [#allocation5], 1
    %1321 = vsyncpa [#allocation8], 1
    %1322 = vsyncpa [#allocation11], 1

</llo_original>
